<compile_context>
chip_gen: v5e
topology: v5e:2x2
jax: 0.10.0
libtpu: 0.0.40
codegen_flags: <defaults>
</compile_context>

<pallas_src>
import functools

import jax
import jax.numpy as jnp
from jax.experimental import pallas as pl
from jax.experimental.pallas import tpu as pltpu


def _vbpca_fwd_kernel(vy_ref, y_ref, wbart_ref, params_ref,
                      xbart_ref, sigmaxt_ref, *, tile_n, c, gj_chunk):
    vy = vy_ref[0, 0]
    y = y_ref[...]                                    # (TN, d), may contain NaN/Inf
    finite = jnp.isfinite(y)
    o = finite.astype(jnp.float32)                    # observation mask
    ymask = jnp.where(finite, y, 0.0)                 # masked data (mbar folded into matmul #1)

    dn = (((1,), (1,)), ((), ()))                     # contract last dims -> (rows, TN)
    # params_ref rows: [ OwwSw0^T (c*c rows) ; (wbar*mbar)^T (c rows) ] so the
    # mbar correction rides the same (M-slack) MXU matmul as the mask reduce.
    big = jax.lax.dot_general(params_ref[...], o, dn,
                              preferred_element_type=jnp.float32)   # (c*c + c, TN)
    t = jax.lax.dot_general(wbart_ref[...], ymask, dn,
                            preferred_element_type=jnp.float32)     # (c, TN)

    # Stage the lane-dense results through the output refs: bounds live ranges
    # so the chunk loop below only ever holds one (c, c, CH) slab in vregs.
    sigmaxt_ref[...] = big[:c * c]                    # O @ (Sigmaw + w w^T), flat
    xbart_ref[...] = t - big[c * c:]                  # wbar^T (O * (Y - mbar))

    # Constants hoisted out of the chunk / Gauss-Jordan loops.
    rows = jax.lax.broadcasted_iota(jnp.int32, (c, c, gj_chunk), 0)
    cols = jax.lax.broadcasted_iota(jnp.int32, (c, c, gj_chunk), 1)
    eye = (rows == cols).astype(jnp.float32)          # (c, c, CH) identity
    vy_eye = vy * eye
    onehot = [
        (jax.lax.broadcasted_iota(jnp.int32, (c, 1), 0) == k).astype(jnp.float32)
        for k in range(c)
    ]

    def chunk(j, carry):
        start = pl.multiple_of(j * gj_chunk, gj_chunk)
        sl = pl.ds(start, gj_chunk)
        a = sigmaxt_ref[:, sl].reshape(c, c, gj_chunk) + vy_eye   # vy*I + O@(ww^T+Sw)
        t_c = xbart_ref[:, sl]                                    # (c, CH)
        inv = eye
        for k in range(c):                            # fully unrolled, c is small
            piv = a[k, k:k + 1, :]                    # (1, CH), > 0 (vy*I + SPD)
            r = pl.reciprocal(piv, approx=True)       # EUP slot
            r = r * (2.0 - piv * r)                   # one Newton step -> ~f32 exact
            arow = a[k] * r                           # normalized pivot row
            irow = inv[k] * r
            # Column k with (piv - 1) at row k: the rank-1 update then writes
            # arow / irow straight into row k -- no per-row selects needed.
            fac = a[:, k, :] - onehot[k]              # (c, CH)
            a = a - fac[:, None, :] * arow[None]
            inv = inv - fac[:, None, :] * irow[None]
        # Lane-dense stores (CH multiple of 128 -> unmasked vst).
        sigmaxt_ref[:, sl] = (vy * inv).reshape(c * c, gj_chunk)
        xbart_ref[:, sl] = jnp.sum(inv * t_c[None], axis=1)
        return carry

    jax.lax.fori_loop(0, tile_n // gj_chunk, chunk, 0)


def vbpca_forward(Y, mbar, wbar, Sigmaw, vy, *, tile_n=1024, gj_chunk=128):
    """Pallas implementation of VBPCA.forward(Y) -> (xbarn, Sigma_xn).

    Requires vy > 0 (no-pivot Gauss-Jordan relies on vy*I + SPD pivots).
    """
    N, d = Y.shape
    c = wbar.shape[1]
    assert tile_n % gj_chunk == 0 and gj_chunk % 128 == 0

    # Cap the tile so the (single, "parallel") grid axis has >= 2 steps when
    # there is enough work: v7x has 2 TensorCores sharded via this axis.
    half = -(-N // 2)
    cap = max(gj_chunk, -(-half // gj_chunk) * gj_chunk)
    tile = max(gj_chunk, min(tile_n, cap))

    n_pad = -(-N // tile) * tile
    Yf = jnp.asarray(Y, jnp.float32)
    if n_pad != N:
        # Padded tail rows are finite zeros -> mask = 1, A stays well
        # conditioned; their results are sliced off below.
        Yf = jnp.pad(Yf, ((0, n_pad - N), (0, 0)))

    mbar = jnp.asarray(mbar, jnp.float32)
    wbar = jnp.asarray(wbar, jnp.float32)
    Sigmaw = jnp.asarray(Sigmaw, jnp.float32)

    # Parameter glue (tiny): OwwSw0^T = (Sigmaw + wbar wbar^T) as (c*c, d),
    # stacked with (wbar * mbar)^T so matmul #1 also produces the mbar
    # correction for xbar.
    wbar_t = jnp.transpose(wbar)                                     # (c, d)
    oww0_t = jnp.transpose(
        (Sigmaw + wbar[:, :, None] * wbar[:, None, :]).reshape(d, c * c))
    params_t = jnp.concatenate([oww0_t, wbar_t * mbar[None, :]], axis=0)
    vy_arr = jnp.asarray(vy, jnp.float32).reshape(1, 1)

    kernel = functools.partial(_vbpca_fwd_kernel, tile_n=tile, c=c,
                               gj_chunk=gj_chunk)
    xbart, sigmaxt = pl.pallas_call(
        kernel,
        out_shape=(
            jax.ShapeDtypeStruct((c, n_pad), jnp.float32),
            jax.ShapeDtypeStruct((c * c, n_pad), jnp.float32),
        ),
        grid=(n_pad // tile,),
        in_specs=[
            pl.BlockSpec(memory_space=pltpu.MemorySpace.SMEM),       # vy scalar
            pl.BlockSpec((tile, d), lambda i: (i, 0)),               # Y tile, natural layout
            pl.BlockSpec((c, d), lambda i: (0, 0)),                  # wbar^T
            pl.BlockSpec((c * c + c, d), lambda i: (0, 0)),          # [OwwSw0^T ; (wbar*mbar)^T]
        ],
        out_specs=(
            pl.BlockSpec((c, tile), lambda i: (0, i)),               # xbar^T
            pl.BlockSpec((c * c, tile), lambda i: (0, i)),           # Sigma_x^T flat
        ),
        # For very large d, add a d-grid axis ("arbitrary") with VMEM
        # accumulators and size the tiles against v7x's 64 MiB VMEM
        # (raise vmem_limit_bytes explicitly, leave headroom).
        compiler_params=pltpu.CompilerParams(
            dimension_semantics=("parallel",)),
    )(vy_arr, Yf, wbar_t, params_t)

    xbarn = jnp.transpose(xbart[:, :N])                              # (N, c)
    Sigma_xn = jnp.transpose(sigmaxt[:, :N]).reshape(N, c, c)        # (N, c, c)
    return xbarn, Sigma_xn


def vbpca_forward_ref(Y, mbar, wbar, Sigmaw, vy):
    """Pure-JAX reference mirroring the PyTorch forward (no Y_indices)."""
    N, d = Y.shape
    c = wbar.shape[1]
    O = jnp.isfinite(Y).astype(jnp.float32)
    Yn = jnp.nan_to_num(Y)
    oww0 = (Sigmaw + wbar[:, :, None] * wbar[:, None, :]).reshape(d, c * c)
    OwwSw = (O @ oww0).reshape(N, c, c)
    bS = vy * jnp.linalg.inv(vy * jnp.eye(c, dtype=Y.dtype)[None] + OwwSw)
    xbar = jnp.einsum('nlk,ni,ik,ni->nl', bS / vy, O, wbar, Yn - mbar)
    return xbar, bS


if __name__ == "__main__":
    N, d, c = 512, 128, 8

    key = jax.random.PRNGKey(0)
    k1, k2, k3, k4 = jax.random.split(key, 4)

    # Data with ~10% missing (NaN) entries, as the module expects.
    Y = jax.random.normal(k1, (N, d), dtype=jnp.float32)
    nan_mask = jax.random.uniform(k2, (N, d)) < 0.1
    Y = jnp.where(nan_mask, jnp.nan, Y)

    # Deterministic synthetic parameters (shapes from VBPCA.__init__):
    #   mbar (d,), wbar (d, c), Sigmaw (d, c, c) = eye, vy scalar = 1.
    mbar = 0.1 * jax.random.normal(k3, (d,), dtype=jnp.float32)
    wbar = 0.2 * jax.random.normal(k4, (d, c), dtype=jnp.float32)
    Sigmaw = jnp.broadcast_to(jnp.eye(c, dtype=jnp.float32), (d, c, c))
    vy = jnp.float32(1.0)

    xbarn, Sigma_xn = vbpca_forward(Y, mbar, wbar, Sigmaw, vy)
    jax.block_until_ready((xbarn, Sigma_xn))

    x_ref, S_ref = vbpca_forward_ref(Y, mbar, wbar, Sigmaw, vy)
    assert xbarn.shape == (N, c) and Sigma_xn.shape == (N, c, c)
    assert jnp.allclose(xbarn, x_ref, atol=1e-3, rtol=1e-3)
    assert jnp.allclose(Sigma_xn, S_ref, atol=1e-3, rtol=1e-3)

    print("KERNEL_OK")
</pallas_src>

<mosaic_0001>
module attributes {stable_mosaic.version = 11 : i64} {
  func.func @_vbpca_fwd_kernel(%arg0: i32, %arg1: memref<1x1xf32, #tpu.memory_space<smem>>, %arg2: memref<256x128xf32, #tpu.memory_space<vmem>>, %arg3: memref<8x128xf32, #tpu.memory_space<vmem>>, %arg4: memref<72x128xf32, #tpu.memory_space<vmem>>, %arg5: memref<8x256xf32, #tpu.memory_space<vmem>>, %arg6: memref<64x256xf32, #tpu.memory_space<vmem>>) attributes {dimension_semantics = [#tpu.dimension_semantics<parallel>], iteration_bounds = array<i64: 2>, scalar_prefetch = 0 : i64, scratch_operands = 0 : i64, tpu.core_type = #tpu.core_type<tc>, window_params = [{transform_indices = @transform_0, window_bounds = array<i64: 1, 1>}, {transform_indices = @transform_1, window_bounds = array<i64: 256, 128>}, {pipeline_mode = #tpu.pipeline_mode<synchronous>, transform_indices = @transform_2, window_bounds = array<i64: 8, 128>}, {pipeline_mode = #tpu.pipeline_mode<synchronous>, transform_indices = @transform_3, window_bounds = array<i64: 72, 128>}, {transform_indices = @transform_4, window_bounds = array<i64: 8, 256>}, {transform_indices = @transform_5, window_bounds = array<i64: 64, 256>}]} {
    %c0 = arith.constant 0 : index
    %c0_0 = arith.constant 0 : index
    %0 = memref.load %arg1[%c0, %c0_0] : memref<1x1xf32, #tpu.memory_space<smem>>
    %c0_1 = arith.constant 0 : index
    %c0_2 = arith.constant 0 : index
    %1 = vector.load %arg2[%c0_1, %c0_2] : memref<256x128xf32, #tpu.memory_space<vmem>>, vector<256x128xf32>
    %2 = tpu.weird %1 : vector<256x128xf32> -> vector<256x128xi1>
    %cst = arith.constant dense<true> : vector<256x128xi1>
    %3 = arith.xori %2, %cst : vector<256x128xi1>
    %4 = arith.extui %3 : vector<256x128xi1> to vector<256x128xi32>
    %5 = arith.sitofp %4 : vector<256x128xi32> to vector<256x128xf32>
    %cst_3 = arith.constant 0.000000e+00 : f32
    %6 = vector.broadcast %cst_3 : f32 to vector<256x128xf32>
    %7 = arith.select %3, %1, %6 : vector<256x128xi1>, vector<256x128xf32>
    %c0_4 = arith.constant 0 : index
    %c0_5 = arith.constant 0 : index
    %8 = vector.load %arg4[%c0_4, %c0_5] : memref<72x128xf32, #tpu.memory_space<vmem>>, vector<72x128xf32>
    %cst_6 = arith.constant dense<0.000000e+00> : vector<72x256xf32>
    %9 = tpu.matmul %8, %5, %cst_6 {dimension_numbers = #tpu.dot_dimension_numbers<[1], [1], [0], [0], [0, 0, 1, 0], [], []>} : vector<72x128xf32>, vector<256x128xf32>, vector<72x256xf32> -> vector<72x256xf32>
    %c0_7 = arith.constant 0 : index
    %c0_8 = arith.constant 0 : index
    %10 = vector.load %arg3[%c0_7, %c0_8] : memref<8x128xf32, #tpu.memory_space<vmem>>, vector<8x128xf32>
    %cst_9 = arith.constant dense<0.000000e+00> : vector<8x256xf32>
    %11 = tpu.matmul %10, %7, %cst_9 {dimension_numbers = #tpu.dot_dimension_numbers<[1], [1], [0], [0], [0, 0, 1, 0], [], []>} : vector<8x128xf32>, vector<256x128xf32>, vector<8x256xf32> -> vector<8x256xf32>
    %12 = vector.extract_strided_slice %9 {offsets = [0, 0], sizes = [64, 256], strides = [1, 1]} : vector<72x256xf32> to vector<64x256xf32>
    %c0_10 = arith.constant 0 : index
    %c0_11 = arith.constant 0 : index
    %13 = vector.load %arg6[%c0_10, %c0_11] : memref<64x256xf32, #tpu.memory_space<vmem>>, vector<64x256xf32>
    tpu.vector_store %arg6[%c0_10, %c0_11], %12 {strides = array<i32>} : memref<64x256xf32, #tpu.memory_space<vmem>>, vector<64x256xf32>,
    %14 = vector.extract_strided_slice %9 {offsets = [64, 0], sizes = [8, 256], strides = [1, 1]} : vector<72x256xf32> to vector<8x256xf32>
    %15 = arith.subf %11, %14 : vector<8x256xf32>
    %c0_12 = arith.constant 0 : index
    %c0_13 = arith.constant 0 : index
    %16 = vector.load %arg5[%c0_12, %c0_13] : memref<8x256xf32, #tpu.memory_space<vmem>>, vector<8x256xf32>
    tpu.vector_store %arg5[%c0_12, %c0_13], %15 {strides = array<i32>} : memref<8x256xf32, #tpu.memory_space<vmem>>, vector<8x256xf32>,
    %17 = tpu.iota {dimensions = array<i32: 0>} : vector<8x8x128xi32>
    %18 = tpu.iota {dimensions = array<i32: 1>} : vector<8x8x128xi32>
    %19 = arith.cmpi eq, %17, %18 : vector<8x8x128xi32>
    %20 = arith.extui %19 : vector<8x8x128xi1> to vector<8x8x128xi32>
    %21 = arith.sitofp %20 : vector<8x8x128xi32> to vector<8x8x128xf32>
    %22 = vector.broadcast %0 : f32 to vector<8x8x128xf32>
    %23 = arith.mulf %22, %21 : vector<8x8x128xf32>
    %24 = tpu.iota {dimensions = array<i32: 0>} : vector<8x1xi32>
    %c0_i32 = arith.constant 0 : i32
    %25 = vector.broadcast %c0_i32 : i32 to vector<8x1xi32>
    %26 = arith.cmpi eq, %24, %25 : vector<8x1xi32>
    %27 = arith.extui %26 : vector<8x1xi1> to vector<8x1xi32>
    %28 = arith.sitofp %27 : vector<8x1xi32> to vector<8x1xf32>
    %29 = tpu.iota {dimensions = array<i32: 0>} : vector<8x1xi32>
    %c1_i32 = arith.constant 1 : i32
    %30 = vector.broadcast %c1_i32 : i32 to vector<8x1xi32>
    %31 = arith.cmpi eq, %29, %30 : vector<8x1xi32>
    %32 = arith.extui %31 : vector<8x1xi1> to vector<8x1xi32>
    %33 = arith.sitofp %32 : vector<8x1xi32> to vector<8x1xf32>
    %34 = tpu.iota {dimensions = array<i32: 0>} : vector<8x1xi32>
    %c2_i32 = arith.constant 2 : i32
    %35 = vector.broadcast %c2_i32 : i32 to vector<8x1xi32>
    %36 = arith.cmpi eq, %34, %35 : vector<8x1xi32>
    %37 = arith.extui %36 : vector<8x1xi1> to vector<8x1xi32>
    %38 = arith.sitofp %37 : vector<8x1xi32> to vector<8x1xf32>
    %39 = tpu.iota {dimensions = array<i32: 0>} : vector<8x1xi32>
    %c3_i32 = arith.constant 3 : i32
    %40 = vector.broadcast %c3_i32 : i32 to vector<8x1xi32>
    %41 = arith.cmpi eq, %39, %40 : vector<8x1xi32>
    %42 = arith.extui %41 : vector<8x1xi1> to vector<8x1xi32>
    %43 = arith.sitofp %42 : vector<8x1xi32> to vector<8x1xf32>
    %44 = tpu.iota {dimensions = array<i32: 0>} : vector<8x1xi32>
    %c4_i32 = arith.constant 4 : i32
    %45 = vector.broadcast %c4_i32 : i32 to vector<8x1xi32>
    %46 = arith.cmpi eq, %44, %45 : vector<8x1xi32>
    %47 = arith.extui %46 : vector<8x1xi1> to vector<8x1xi32>
    %48 = arith.sitofp %47 : vector<8x1xi32> to vector<8x1xf32>
    %49 = tpu.iota {dimensions = array<i32: 0>} : vector<8x1xi32>
    %c5_i32 = arith.constant 5 : i32
    %50 = vector.broadcast %c5_i32 : i32 to vector<8x1xi32>
    %51 = arith.cmpi eq, %49, %50 : vector<8x1xi32>
    %52 = arith.extui %51 : vector<8x1xi1> to vector<8x1xi32>
    %53 = arith.sitofp %52 : vector<8x1xi32> to vector<8x1xf32>
    %54 = tpu.iota {dimensions = array<i32: 0>} : vector<8x1xi32>
    %c6_i32 = arith.constant 6 : i32
    %55 = vector.broadcast %c6_i32 : i32 to vector<8x1xi32>
    %56 = arith.cmpi eq, %54, %55 : vector<8x1xi32>
    %57 = arith.extui %56 : vector<8x1xi1> to vector<8x1xi32>
    %58 = arith.sitofp %57 : vector<8x1xi32> to vector<8x1xf32>
    %59 = tpu.iota {dimensions = array<i32: 0>} : vector<8x1xi32>
    %c7_i32 = arith.constant 7 : i32
    %60 = vector.broadcast %c7_i32 : i32 to vector<8x1xi32>
    %61 = arith.cmpi eq, %59, %60 : vector<8x1xi32>
    %62 = arith.extui %61 : vector<8x1xi1> to vector<8x1xi32>
    %63 = arith.sitofp %62 : vector<8x1xi32> to vector<8x1xf32>
    %c0_i32_14 = arith.constant 0 : i32
    %c2_i32_15 = arith.constant 2 : i32
    %64 = arith.addi %c0_i32_14, %c2_i32_15 : i32
    %c1_i32_16 = arith.constant 1 : i32
    scf.for %arg7 = %c0_i32_14 to %64 step %c1_i32_16  : i32 {
      %c128_i32 = arith.constant 128 : i32
      %65 = arith.muli %arg7, %c128_i32 : i32
      %66 = tpu.assume_multiple %65, 128 : i32
      %c0_18 = arith.constant 0 : index
      %67 = arith.index_cast %66 : i32 to index
      %68 = vector.load %arg6[%c0_18, %67] : memref<64x256xf32, #tpu.memory_space<vmem>>, vector<64x128xf32>
      %69 = vector.shape_cast %68 : vector<64x128xf32> to vector<8x8x128xf32>
      %70 = arith.addf %69, %23 : vector<8x8x128xf32>
      %c0_19 = arith.constant 0 : index
      %71 = arith.index_cast %66 : i32 to index
      %72 = vector.load %arg5[%c0_19, %71] : memref<8x256xf32, #tpu.memory_space<vmem>>, vector<8x128xf32>
      %73 = vector.extract_strided_slice %70 {offsets = [0, 0, 0], sizes = [1, 1, 128], strides = [1, 1, 1]} : vector<8x8x128xf32> to vector<1x1x128xf32>
      %74 = vector.shape_cast %73 : vector<1x1x128xf32> to vector<1x128xf32>
      %75 = tpu.reciprocal %74 {approx = true} : vector<1x128xf32> -> vector<1x128xf32>
      %76 = arith.mulf %74, %75 : vector<1x128xf32>
      %cst_20 = arith.constant 2.000000e+00 : f32
      %77 = vector.broadcast %cst_20 : f32 to vector<1x128xf32>
      %78 = arith.subf %77, %76 : vector<1x128xf32>
      %79 = arith.mulf %75, %78 : vector<1x128xf32>
      %80 = vector.extract_strided_slice %70 {offsets = [0, 0, 0], sizes = [1, 8, 128], strides = [1, 1, 1]} : vector<8x8x128xf32> to vector<1x8x128xf32>
      %81 = vector.shape_cast %80 : vector<1x8x128xf32> to vector<8x128xf32>
      %82 = vector.broadcast %79 : vector<1x128xf32> to vector<8x128xf32>
      %83 = arith.mulf %81, %82 : vector<8x128xf32>
      %84 = vector.extract_strided_slice %21 {offsets = [0, 0, 0], sizes = [1, 8, 128], strides = [1, 1, 1]} : vector<8x8x128xf32> to vector<1x8x128xf32>
      %85 = vector.shape_cast %84 : vector<1x8x128xf32> to vector<8x128xf32>
      %86 = vector.broadcast %79 : vector<1x128xf32> to vector<8x128xf32>
      %87 = arith.mulf %85, %86 : vector<8x128xf32>
      %88 = vector.extract_strided_slice %70 {offsets = [0, 0, 0], sizes = [8, 1, 128], strides = [1, 1, 1]} : vector<8x8x128xf32> to vector<8x1x128xf32>
      %89 = vector.shape_cast %88 : vector<8x1x128xf32> to vector<8x128xf32>
      %90 = vector.broadcast %28 : vector<8x1xf32> to vector<8x128xf32>
      %91 = arith.subf %89, %90 : vector<8x128xf32>
      %92 = vector.shape_cast %91 : vector<8x128xf32> to vector<8x1x128xf32>
      %93 = vector.shape_cast %83 : vector<8x128xf32> to vector<1x8x128xf32>
      %94 = vector.broadcast %92 : vector<8x1x128xf32> to vector<8x8x128xf32>
      %95 = vector.broadcast %93 : vector<1x8x128xf32> to vector<8x8x128xf32>
      %96 = arith.mulf %94, %95 : vector<8x8x128xf32>
      %97 = arith.subf %70, %96 : vector<8x8x128xf32>
      %98 = vector.shape_cast %91 : vector<8x128xf32> to vector<8x1x128xf32>
      %99 = vector.shape_cast %87 : vector<8x128xf32> to vector<1x8x128xf32>
      %100 = vector.broadcast %98 : vector<8x1x128xf32> to vector<8x8x128xf32>
      %101 = vector.broadcast %99 : vector<1x8x128xf32> to vector<8x8x128xf32>
      %102 = arith.mulf %100, %101 : vector<8x8x128xf32>
      %103 = arith.subf %21, %102 : vector<8x8x128xf32>
      %104 = vector.extract_strided_slice %97 {offsets = [1, 1, 0], sizes = [1, 1, 128], strides = [1, 1, 1]} : vector<8x8x128xf32> to vector<1x1x128xf32>
      %105 = vector.shape_cast %104 : vector<1x1x128xf32> to vector<1x128xf32>
      %106 = tpu.reciprocal %105 {approx = true} : vector<1x128xf32> -> vector<1x128xf32>
      %107 = arith.mulf %105, %106 : vector<1x128xf32>
      %cst_21 = arith.constant 2.000000e+00 : f32
      %108 = vector.broadcast %cst_21 : f32 to vector<1x128xf32>
      %109 = arith.subf %108, %107 : vector<1x128xf32>
      %110 = arith.mulf %106, %109 : vector<1x128xf32>
      %111 = vector.extract_strided_slice %97 {offsets = [1, 0, 0], sizes = [1, 8, 128], strides = [1, 1, 1]} : vector<8x8x128xf32> to vector<1x8x128xf32>
      %112 = vector.shape_cast %111 : vector<1x8x128xf32> to vector<8x128xf32>
      %113 = vector.broadcast %110 : vector<1x128xf32> to vector<8x128xf32>
      %114 = arith.mulf %112, %113 : vector<8x128xf32>
      %115 = vector.extract_strided_slice %103 {offsets = [1, 0, 0], sizes = [1, 8, 128], strides = [1, 1, 1]} : vector<8x8x128xf32> to vector<1x8x128xf32>
      %116 = vector.shape_cast %115 : vector<1x8x128xf32> to vector<8x128xf32>
      %117 = vector.broadcast %110 : vector<1x128xf32> to vector<8x128xf32>
      %118 = arith.mulf %116, %117 : vector<8x128xf32>
      %119 = vector.extract_strided_slice %97 {offsets = [0, 1, 0], sizes = [8, 1, 128], strides = [1, 1, 1]} : vector<8x8x128xf32> to vector<8x1x128xf32>
      %120 = vector.shape_cast %119 : vector<8x1x128xf32> to vector<8x128xf32>
      %121 = vector.broadcast %33 : vector<8x1xf32> to vector<8x128xf32>
      %122 = arith.subf %120, %121 : vector<8x128xf32>
      %123 = vector.shape_cast %122 : vector<8x128xf32> to vector<8x1x128xf32>
      %124 = vector.shape_cast %114 : vector<8x128xf32> to vector<1x8x128xf32>
      %125 = vector.broadcast %123 : vector<8x1x128xf32> to vector<8x8x128xf32>
      %126 = vector.broadcast %124 : vector<1x8x128xf32> to vector<8x8x128xf32>
      %127 = arith.mulf %125, %126 : vector<8x8x128xf32>
      %128 = arith.subf %97, %127 : vector<8x8x128xf32>
      %129 = vector.shape_cast %122 : vector<8x128xf32> to vector<8x1x128xf32>
      %130 = vector.shape_cast %118 : vector<8x128xf32> to vector<1x8x128xf32>
      %131 = vector.broadcast %129 : vector<8x1x128xf32> to vector<8x8x128xf32>
      %132 = vector.broadcast %130 : vector<1x8x128xf32> to vector<8x8x128xf32>
      %133 = arith.mulf %131, %132 : vector<8x8x128xf32>
      %134 = arith.subf %103, %133 : vector<8x8x128xf32>
      %135 = vector.extract_strided_slice %128 {offsets = [2, 2, 0], sizes = [1, 1, 128], strides = [1, 1, 1]} : vector<8x8x128xf32> to vector<1x1x128xf32>
      %136 = vector.shape_cast %135 : vector<1x1x128xf32> to vector<1x128xf32>
      %137 = tpu.reciprocal %136 {approx = true} : vector<1x128xf32> -> vector<1x128xf32>
      %138 = arith.mulf %136, %137 : vector<1x128xf32>
      %cst_22 = arith.constant 2.000000e+00 : f32
      %139 = vector.broadcast %cst_22 : f32 to vector<1x128xf32>
      %140 = arith.subf %139, %138 : vector<1x128xf32>
      %141 = arith.mulf %137, %140 : vector<1x128xf32>
      %142 = vector.extract_strided_slice %128 {offsets = [2, 0, 0], sizes = [1, 8, 128], strides = [1, 1, 1]} : vector<8x8x128xf32> to vector<1x8x128xf32>
      %143 = vector.shape_cast %142 : vector<1x8x128xf32> to vector<8x128xf32>
      %144 = vector.broadcast %141 : vector<1x128xf32> to vector<8x128xf32>
      %145 = arith.mulf %143, %144 : vector<8x128xf32>
      %146 = vector.extract_strided_slice %134 {offsets = [2, 0, 0], sizes = [1, 8, 128], strides = [1, 1, 1]} : vector<8x8x128xf32> to vector<1x8x128xf32>
      %147 = vector.shape_cast %146 : vector<1x8x128xf32> to vector<8x128xf32>
      %148 = vector.broadcast %141 : vector<1x128xf32> to vector<8x128xf32>
      %149 = arith.mulf %147, %148 : vector<8x128xf32>
      %150 = vector.extract_strided_slice %128 {offsets = [0, 2, 0], sizes = [8, 1, 128], strides = [1, 1, 1]} : vector<8x8x128xf32> to vector<8x1x128xf32>
      %151 = vector.shape_cast %150 : vector<8x1x128xf32> to vector<8x128xf32>
      %152 = vector.broadcast %38 : vector<8x1xf32> to vector<8x128xf32>
      %153 = arith.subf %151, %152 : vector<8x128xf32>
      %154 = vector.shape_cast %153 : vector<8x128xf32> to vector<8x1x128xf32>
      %155 = vector.shape_cast %145 : vector<8x128xf32> to vector<1x8x128xf32>
      %156 = vector.broadcast %154 : vector<8x1x128xf32> to vector<8x8x128xf32>
      %157 = vector.broadcast %155 : vector<1x8x128xf32> to vector<8x8x128xf32>
      %158 = arith.mulf %156, %157 : vector<8x8x128xf32>
      %159 = arith.subf %128, %158 : vector<8x8x128xf32>
      %160 = vector.shape_cast %153 : vector<8x128xf32> to vector<8x1x128xf32>
      %161 = vector.shape_cast %149 : vector<8x128xf32> to vector<1x8x128xf32>
      %162 = vector.broadcast %160 : vector<8x1x128xf32> to vector<8x8x128xf32>
      %163 = vector.broadcast %161 : vector<1x8x128xf32> to vector<8x8x128xf32>
      %164 = arith.mulf %162, %163 : vector<8x8x128xf32>
      %165 = arith.subf %134, %164 : vector<8x8x128xf32>
      %166 = vector.extract_strided_slice %159 {offsets = [3, 3, 0], sizes = [1, 1, 128], strides = [1, 1, 1]} : vector<8x8x128xf32> to vector<1x1x128xf32>
      %167 = vector.shape_cast %166 : vector<1x1x128xf32> to vector<1x128xf32>
      %168 = tpu.reciprocal %167 {approx = true} : vector<1x128xf32> -> vector<1x128xf32>
      %169 = arith.mulf %167, %168 : vector<1x128xf32>
      %cst_23 = arith.constant 2.000000e+00 : f32
      %170 = vector.broadcast %cst_23 : f32 to vector<1x128xf32>
      %171 = arith.subf %170, %169 : vector<1x128xf32>
      %172 = arith.mulf %168, %171 : vector<1x128xf32>
      %173 = vector.extract_strided_slice %159 {offsets = [3, 0, 0], sizes = [1, 8, 128], strides = [1, 1, 1]} : vector<8x8x128xf32> to vector<1x8x128xf32>
      %174 = vector.shape_cast %173 : vector<1x8x128xf32> to vector<8x128xf32>
      %175 = vector.broadcast %172 : vector<1x128xf32> to vector<8x128xf32>
      %176 = arith.mulf %174, %175 : vector<8x128xf32>
      %177 = vector.extract_strided_slice %165 {offsets = [3, 0, 0], sizes = [1, 8, 128], strides = [1, 1, 1]} : vector<8x8x128xf32> to vector<1x8x128xf32>
      %178 = vector.shape_cast %177 : vector<1x8x128xf32> to vector<8x128xf32>
      %179 = vector.broadcast %172 : vector<1x128xf32> to vector<8x128xf32>
      %180 = arith.mulf %178, %179 : vector<8x128xf32>
      %181 = vector.extract_strided_slice %159 {offsets = [0, 3, 0], sizes = [8, 1, 128], strides = [1, 1, 1]} : vector<8x8x128xf32> to vector<8x1x128xf32>
      %182 = vector.shape_cast %181 : vector<8x1x128xf32> to vector<8x128xf32>
      %183 = vector.broadcast %43 : vector<8x1xf32> to vector<8x128xf32>
      %184 = arith.subf %182, %183 : vector<8x128xf32>
      %185 = vector.shape_cast %184 : vector<8x128xf32> to vector<8x1x128xf32>
      %186 = vector.shape_cast %176 : vector<8x128xf32> to vector<1x8x128xf32>
      %187 = vector.broadcast %185 : vector<8x1x128xf32> to vector<8x8x128xf32>
      %188 = vector.broadcast %186 : vector<1x8x128xf32> to vector<8x8x128xf32>
      %189 = arith.mulf %187, %188 : vector<8x8x128xf32>
      %190 = arith.subf %159, %189 : vector<8x8x128xf32>
      %191 = vector.shape_cast %184 : vector<8x128xf32> to vector<8x1x128xf32>
      %192 = vector.shape_cast %180 : vector<8x128xf32> to vector<1x8x128xf32>
      %193 = vector.broadcast %191 : vector<8x1x128xf32> to vector<8x8x128xf32>
      %194 = vector.broadcast %192 : vector<1x8x128xf32> to vector<8x8x128xf32>
      %195 = arith.mulf %193, %194 : vector<8x8x128xf32>
      %196 = arith.subf %165, %195 : vector<8x8x128xf32>
      %197 = vector.extract_strided_slice %190 {offsets = [4, 4, 0], sizes = [1, 1, 128], strides = [1, 1, 1]} : vector<8x8x128xf32> to vector<1x1x128xf32>
      %198 = vector.shape_cast %197 : vector<1x1x128xf32> to vector<1x128xf32>
      %199 = tpu.reciprocal %198 {approx = true} : vector<1x128xf32> -> vector<1x128xf32>
      %200 = arith.mulf %198, %199 : vector<1x128xf32>
      %cst_24 = arith.constant 2.000000e+00 : f32
      %201 = vector.broadcast %cst_24 : f32 to vector<1x128xf32>
      %202 = arith.subf %201, %200 : vector<1x128xf32>
      %203 = arith.mulf %199, %202 : vector<1x128xf32>
      %204 = vector.extract_strided_slice %190 {offsets = [4, 0, 0], sizes = [1, 8, 128], strides = [1, 1, 1]} : vector<8x8x128xf32> to vector<1x8x128xf32>
      %205 = vector.shape_cast %204 : vector<1x8x128xf32> to vector<8x128xf32>
      %206 = vector.broadcast %203 : vector<1x128xf32> to vector<8x128xf32>
      %207 = arith.mulf %205, %206 : vector<8x128xf32>
      %208 = vector.extract_strided_slice %196 {offsets = [4, 0, 0], sizes = [1, 8, 128], strides = [1, 1, 1]} : vector<8x8x128xf32> to vector<1x8x128xf32>
      %209 = vector.shape_cast %208 : vector<1x8x128xf32> to vector<8x128xf32>
      %210 = vector.broadcast %203 : vector<1x128xf32> to vector<8x128xf32>
      %211 = arith.mulf %209, %210 : vector<8x128xf32>
      %212 = vector.extract_strided_slice %190 {offsets = [0, 4, 0], sizes = [8, 1, 128], strides = [1, 1, 1]} : vector<8x8x128xf32> to vector<8x1x128xf32>
      %213 = vector.shape_cast %212 : vector<8x1x128xf32> to vector<8x128xf32>
      %214 = vector.broadcast %48 : vector<8x1xf32> to vector<8x128xf32>
      %215 = arith.subf %213, %214 : vector<8x128xf32>
      %216 = vector.shape_cast %215 : vector<8x128xf32> to vector<8x1x128xf32>
      %217 = vector.shape_cast %207 : vector<8x128xf32> to vector<1x8x128xf32>
      %218 = vector.broadcast %216 : vector<8x1x128xf32> to vector<8x8x128xf32>
      %219 = vector.broadcast %217 : vector<1x8x128xf32> to vector<8x8x128xf32>
      %220 = arith.mulf %218, %219 : vector<8x8x128xf32>
      %221 = arith.subf %190, %220 : vector<8x8x128xf32>
      %222 = vector.shape_cast %215 : vector<8x128xf32> to vector<8x1x128xf32>
      %223 = vector.shape_cast %211 : vector<8x128xf32> to vector<1x8x128xf32>
      %224 = vector.broadcast %222 : vector<8x1x128xf32> to vector<8x8x128xf32>
      %225 = vector.broadcast %223 : vector<1x8x128xf32> to vector<8x8x128xf32>
      %226 = arith.mulf %224, %225 : vector<8x8x128xf32>
      %227 = arith.subf %196, %226 : vector<8x8x128xf32>
      %228 = vector.extract_strided_slice %221 {offsets = [5, 5, 0], sizes = [1, 1, 128], strides = [1, 1, 1]} : vector<8x8x128xf32> to vector<1x1x128xf32>
      %229 = vector.shape_cast %228 : vector<1x1x128xf32> to vector<1x128xf32>
      %230 = tpu.reciprocal %229 {approx = true} : vector<1x128xf32> -> vector<1x128xf32>
      %231 = arith.mulf %229, %230 : vector<1x128xf32>
      %cst_25 = arith.constant 2.000000e+00 : f32
      %232 = vector.broadcast %cst_25 : f32 to vector<1x128xf32>
      %233 = arith.subf %232, %231 : vector<1x128xf32>
      %234 = arith.mulf %230, %233 : vector<1x128xf32>
      %235 = vector.extract_strided_slice %221 {offsets = [5, 0, 0], sizes = [1, 8, 128], strides = [1, 1, 1]} : vector<8x8x128xf32> to vector<1x8x128xf32>
      %236 = vector.shape_cast %235 : vector<1x8x128xf32> to vector<8x128xf32>
      %237 = vector.broadcast %234 : vector<1x128xf32> to vector<8x128xf32>
      %238 = arith.mulf %236, %237 : vector<8x128xf32>
      %239 = vector.extract_strided_slice %227 {offsets = [5, 0, 0], sizes = [1, 8, 128], strides = [1, 1, 1]} : vector<8x8x128xf32> to vector<1x8x128xf32>
      %240 = vector.shape_cast %239 : vector<1x8x128xf32> to vector<8x128xf32>
      %241 = vector.broadcast %234 : vector<1x128xf32> to vector<8x128xf32>
      %242 = arith.mulf %240, %241 : vector<8x128xf32>
      %243 = vector.extract_strided_slice %221 {offsets = [0, 5, 0], sizes = [8, 1, 128], strides = [1, 1, 1]} : vector<8x8x128xf32> to vector<8x1x128xf32>
      %244 = vector.shape_cast %243 : vector<8x1x128xf32> to vector<8x128xf32>
      %245 = vector.broadcast %53 : vector<8x1xf32> to vector<8x128xf32>
      %246 = arith.subf %244, %245 : vector<8x128xf32>
      %247 = vector.shape_cast %246 : vector<8x128xf32> to vector<8x1x128xf32>
      %248 = vector.shape_cast %238 : vector<8x128xf32> to vector<1x8x128xf32>
      %249 = vector.broadcast %247 : vector<8x1x128xf32> to vector<8x8x128xf32>
      %250 = vector.broadcast %248 : vector<1x8x128xf32> to vector<8x8x128xf32>
      %251 = arith.mulf %249, %250 : vector<8x8x128xf32>
      %252 = arith.subf %221, %251 : vector<8x8x128xf32>
      %253 = vector.shape_cast %246 : vector<8x128xf32> to vector<8x1x128xf32>
      %254 = vector.shape_cast %242 : vector<8x128xf32> to vector<1x8x128xf32>
      %255 = vector.broadcast %253 : vector<8x1x128xf32> to vector<8x8x128xf32>
      %256 = vector.broadcast %254 : vector<1x8x128xf32> to vector<8x8x128xf32>
      %257 = arith.mulf %255, %256 : vector<8x8x128xf32>
      %258 = arith.subf %227, %257 : vector<8x8x128xf32>
      %259 = vector.extract_strided_slice %252 {offsets = [6, 6, 0], sizes = [1, 1, 128], strides = [1, 1, 1]} : vector<8x8x128xf32> to vector<1x1x128xf32>
      %260 = vector.shape_cast %259 : vector<1x1x128xf32> to vector<1x128xf32>
      %261 = tpu.reciprocal %260 {approx = true} : vector<1x128xf32> -> vector<1x128xf32>
      %262 = arith.mulf %260, %261 : vector<1x128xf32>
      %cst_26 = arith.constant 2.000000e+00 : f32
      %263 = vector.broadcast %cst_26 : f32 to vector<1x128xf32>
      %264 = arith.subf %263, %262 : vector<1x128xf32>
      %265 = arith.mulf %261, %264 : vector<1x128xf32>
      %266 = vector.extract_strided_slice %252 {offsets = [6, 0, 0], sizes = [1, 8, 128], strides = [1, 1, 1]} : vector<8x8x128xf32> to vector<1x8x128xf32>
      %267 = vector.shape_cast %266 : vector<1x8x128xf32> to vector<8x128xf32>
      %268 = vector.broadcast %265 : vector<1x128xf32> to vector<8x128xf32>
      %269 = arith.mulf %267, %268 : vector<8x128xf32>
      %270 = vector.extract_strided_slice %258 {offsets = [6, 0, 0], sizes = [1, 8, 128], strides = [1, 1, 1]} : vector<8x8x128xf32> to vector<1x8x128xf32>
      %271 = vector.shape_cast %270 : vector<1x8x128xf32> to vector<8x128xf32>
      %272 = vector.broadcast %265 : vector<1x128xf32> to vector<8x128xf32>
      %273 = arith.mulf %271, %272 : vector<8x128xf32>
      %274 = vector.extract_strided_slice %252 {offsets = [0, 6, 0], sizes = [8, 1, 128], strides = [1, 1, 1]} : vector<8x8x128xf32> to vector<8x1x128xf32>
      %275 = vector.shape_cast %274 : vector<8x1x128xf32> to vector<8x128xf32>
      %276 = vector.broadcast %58 : vector<8x1xf32> to vector<8x128xf32>
      %277 = arith.subf %275, %276 : vector<8x128xf32>
      %278 = vector.shape_cast %277 : vector<8x128xf32> to vector<8x1x128xf32>
      %279 = vector.shape_cast %269 : vector<8x128xf32> to vector<1x8x128xf32>
      %280 = vector.broadcast %278 : vector<8x1x128xf32> to vector<8x8x128xf32>
      %281 = vector.broadcast %279 : vector<1x8x128xf32> to vector<8x8x128xf32>
      %282 = arith.mulf %280, %281 : vector<8x8x128xf32>
      %283 = arith.subf %252, %282 : vector<8x8x128xf32>
      %284 = vector.shape_cast %277 : vector<8x128xf32> to vector<8x1x128xf32>
      %285 = vector.shape_cast %273 : vector<8x128xf32> to vector<1x8x128xf32>
      %286 = vector.broadcast %284 : vector<8x1x128xf32> to vector<8x8x128xf32>
      %287 = vector.broadcast %285 : vector<1x8x128xf32> to vector<8x8x128xf32>
      %288 = arith.mulf %286, %287 : vector<8x8x128xf32>
      %289 = arith.subf %258, %288 : vector<8x8x128xf32>
      %290 = vector.extract_strided_slice %283 {offsets = [7, 7, 0], sizes = [1, 1, 128], strides = [1, 1, 1]} : vector<8x8x128xf32> to vector<1x1x128xf32>
      %291 = vector.shape_cast %290 : vector<1x1x128xf32> to vector<1x128xf32>
      %292 = tpu.reciprocal %291 {approx = true} : vector<1x128xf32> -> vector<1x128xf32>
      %293 = arith.mulf %291, %292 : vector<1x128xf32>
      %cst_27 = arith.constant 2.000000e+00 : f32
      %294 = vector.broadcast %cst_27 : f32 to vector<1x128xf32>
      %295 = arith.subf %294, %293 : vector<1x128xf32>
      %296 = arith.mulf %292, %295 : vector<1x128xf32>
      %297 = vector.extract_strided_slice %289 {offsets = [7, 0, 0], sizes = [1, 8, 128], strides = [1, 1, 1]} : vector<8x8x128xf32> to vector<1x8x128xf32>
      %298 = vector.shape_cast %297 : vector<1x8x128xf32> to vector<8x128xf32>
      %299 = vector.broadcast %296 : vector<1x128xf32> to vector<8x128xf32>
      %300 = arith.mulf %298, %299 : vector<8x128xf32>
      %301 = vector.extract_strided_slice %283 {offsets = [0, 7, 0], sizes = [8, 1, 128], strides = [1, 1, 1]} : vector<8x8x128xf32> to vector<8x1x128xf32>
      %302 = vector.shape_cast %301 : vector<8x1x128xf32> to vector<8x128xf32>
      %303 = vector.broadcast %63 : vector<8x1xf32> to vector<8x128xf32>
      %304 = arith.subf %302, %303 : vector<8x128xf32>
      %305 = vector.shape_cast %304 : vector<8x128xf32> to vector<8x1x128xf32>
      %306 = vector.shape_cast %300 : vector<8x128xf32> to vector<1x8x128xf32>
      %307 = vector.broadcast %305 : vector<8x1x128xf32> to vector<8x8x128xf32>
      %308 = vector.broadcast %306 : vector<1x8x128xf32> to vector<8x8x128xf32>
      %309 = arith.mulf %307, %308 : vector<8x8x128xf32>
      %310 = arith.subf %289, %309 : vector<8x8x128xf32>
      %311 = vector.broadcast %0 : f32 to vector<8x8x128xf32>
      %312 = arith.mulf %311, %310 : vector<8x8x128xf32>
      %313 = vector.shape_cast %312 : vector<8x8x128xf32> to vector<64x128xf32>
      %c0_28 = arith.constant 0 : index
      %314 = arith.index_cast %66 : i32 to index
      %315 = vector.load %arg6[%c0_28, %314] : memref<64x256xf32, #tpu.memory_space<vmem>>, vector<64x128xf32>
      tpu.vector_store %arg6[%c0_28, %314], %313 {strides = array<i32>} : memref<64x256xf32, #tpu.memory_space<vmem>>, vector<64x128xf32>,
      %316 = vector.shape_cast %72 : vector<8x128xf32> to vector<1x8x128xf32>
      %317 = vector.broadcast %316 : vector<1x8x128xf32> to vector<8x8x128xf32>
      %318 = arith.mulf %310, %317 : vector<8x8x128xf32>
      %cst_29 = arith.constant dense<0.000000e+00> : vector<8x128xf32>
      %319 = vector.multi_reduction <add>, %318, %cst_29 [1] : vector<8x8x128xf32> to vector<8x128xf32>
      %c0_30 = arith.constant 0 : index
      %320 = arith.index_cast %66 : i32 to index
      %321 = vector.load %arg5[%c0_30, %320] : memref<8x256xf32, #tpu.memory_space<vmem>>, vector<8x128xf32>
      tpu.vector_store %arg5[%c0_30, %320], %319 {strides = array<i32>} : memref<8x256xf32, #tpu.memory_space<vmem>>, vector<8x128xf32>,
    }
    %c2_i32_17 = arith.constant 2 : i32
    return
  }
  func.func @transform_0(%arg0: i32) -> (i32, i32) {
    %c0_i32 = arith.constant 0 : i32
    %c0_i32_0 = arith.constant 0 : i32
    %c0_i32_1 = arith.constant 0 : i32
    return %c0_i32, %c0_i32_0 : i32, i32
  }
  func.func @transform_1(%arg0: i32) -> (i32, i32) {
    %c0_i32 = arith.constant 0 : i32
    %c0_i32_0 = arith.constant 0 : i32
    return %arg0, %c0_i32 : i32, i32
  }
  func.func @transform_2(%arg0: i32) -> (i32, i32) {
    %c0_i32 = arith.constant 0 : i32
    %c0_i32_0 = arith.constant 0 : i32
    %c0_i32_1 = arith.constant 0 : i32
    return %c0_i32, %c0_i32_0 : i32, i32
  }
  func.func @transform_3(%arg0: i32) -> (i32, i32) {
    %c0_i32 = arith.constant 0 : i32
    %c0_i32_0 = arith.constant 0 : i32
    %c0_i32_1 = arith.constant 0 : i32
    return %c0_i32, %c0_i32_0 : i32, i32
  }
  func.func @transform_4(%arg0: i32) -> (i32, i32) {
    %c0_i32 = arith.constant 0 : i32
    %c0_i32_0 = arith.constant 0 : i32
    return %c0_i32, %arg0 : i32, i32
  }
  func.func @transform_5(%arg0: i32) -> (i32, i32) {
    %c0_i32 = arith.constant 0 : i32
    %c0_i32_0 = arith.constant 0 : i32
    return %c0_i32, %arg0 : i32, i32
  }
}

</mosaic_0001>

<llo_original>
// kernel: tpu_custom_call.1
$region0: #{tpu_custom_call.1}
  #allocation0 [shape = 'u32[]', space=smem, size = 0x4, offset = 0x4, fixed_abs, tag = 'smem constant byte address 0x4 - core index']
  #allocation1 [shape = 'u32[72,128]{1,0:T(1,128)}', space=vmem, size = 0x9000, scoped, tag = 'internal scratch']
  #allocation2 [shape = 'f32[1,1]{1,0:T(1,128)S(6)}', space=smem, size = 0x200, scoped, tag = 'scoped memory for tpu_custom_call.1']
  %s0 = inlined_call_operand.<no memory space> [shape: f32[1,1], index: 0, kind: input, shape index: {}]
  %s1 = inlined_call_operand.hbm [shape: f32[512,128], index: 1, kind: input, shape index: {}]
  %s2 = inlined_call_operand.hbm [shape: f32[8,128], index: 2, kind: input, shape index: {}]
  %s3 = inlined_call_operand.hbm [shape: f32[72,128], index: 3, kind: input, shape index: {}]
  %s4 = inlined_call_operand.hbm [shape: f32[8,512], index: 4, kind: output, shape index: {0}]
  %s5 = inlined_call_operand.hbm [shape: f32[64,512], index: 5, kind: output, shape index: {1}]
  %6 = xla_tuple %s4, %s5
  %s7 = sld [smem:[#allocation0]]
  $region76: #{tpu_custom_call.1} parent=0
    _
  %s9 = ssub.s32 1, %s7
  %s10 = scalar_select 0, %s9, %s7
  %11 = sst [smem:[#allocation2]] %s0
  $region1: #{tpu_custom_call.1} parent=0
    #allocation3 [shape = 'u8[262144]{0}', space=vmem, size = 0x40000, scoped, tag = 'input window, operand 1']
    #allocation4 [shape = 's32[2]{0}', space=sflag, size = 0x8, scoped, tag = 'scoped memory for tpu_custom_call.1']
    #allocation5 [shape = 's32[2]{0}', space=sflag, size = 0x8, scoped, tag = 'scoped memory for tpu_custom_call.1']
    #allocation6 [shape = 'u8[4096]{0}', space=vmem, size = 0x1000, scoped, tag = 'input window, operand 2, single buffered']
    #allocation7 [shape = 's32[1]{0}', space=sflag, size = 0x4, scoped, tag = 'scoped memory for tpu_custom_call.1']
    #allocation8 [shape = 'u8[36864]{0}', space=vmem, size = 0x9000, scoped, tag = 'input window, operand 3, single buffered']
    #allocation9 [shape = 'u8[16384]{0}', space=vmem, size = 0x4000, scoped, tag = 'output window, operand 0']
    #allocation10 [shape = 'u8[131072]{0}', space=vmem, size = 0x20000, scoped, tag = 'output window, operand 1']
    #allocation11 [shape = 's32[2]{0}', space=sflag, size = 0x8, scoped, tag = 'scoped memory for tpu_custom_call.1']
    %12 = vsyncpa [#allocation4], 0
    %s13 = scalar_lea.sflag [#allocation4], 1
    %14 = vsyncpa %s13, 0
    %15 = vsyncpa [#allocation7], 0
    %16 = vsyncpa [#allocation5], 0
    %s17 = scalar_lea.sflag [#allocation5], 1
    %18 = vsyncpa %s17, 0
    %19 = vsyncpa [#allocation11], 0
    %s20 = scalar_lea.sflag [#allocation11], 1
    %21 = vsyncpa %s20, 0
    loop: start=0, step=1, limit=4
    $region2: #{tpu_custom_call.1} parent=1 // loop_pre_header
      _
    $region3: #{tpu_custom_call.1} parent=1 // loop_header
      %s23 = sphi 0, %s27
      %p24 = scmp.ge.s32.totalorder %s23, 4
      %s31 = sphi 0, %s31
      %s33 = sphi 0, %s31
      %s34 = sphi 0, %s33
      %s48 = sphi 0, %s34
      %s54 = sphi 0, %s56
      %s57 = sphi 0, %s54
      %s58 = sphi 0, %s57
      %s74 = sphi 0, %s58
      %s78 = sphi 0, %s78
      %s80 = sphi 0, %s78
      %s81 = sphi 0, %s80
      %s95 = sphi 0, %s81
      %s99 = sphi 0, %s99
      %s101 = sphi 0, %s99
      %s102 = sphi 0, %s101
      %s116 = sphi 0, %s102
      %s122 = sphi 0, %s124
      %s125 = sphi 0, %s122
      %s126 = sphi 0, %s125
      %s142 = sphi 0, %s126
      %s148 = sphi 0, %s150
      %s151 = sphi 0, %s148
      %s152 = sphi 0, %s151
      %s168 = sphi 0, %s152
    $region4: #{tpu_custom_call.1} parent=1 // loop_header_branch
      %26 = sbr.rel (%p24) target = $region8
    $region5: #{tpu_custom_call.1} parent=1 // loop_body
      %s28 = ssub.s32 %s23, 1
      %s29 = ssub.s32 %s23, 2
      %s30 = sadd.s32 %s23, 1
      %s32 = sadd.s32 %s31, 1
      %p35 = scmp.eq.s32.totalorder %s23, 1
      %p36 = scmp.ne.s32.totalorder %s31, %s33
      %p37 = scmp.eq.s32.totalorder %s23, 0
      %p38 = por %p36, %p37
      %p39 = scmp.ne.s32.totalorder %s31, %s33
      %p40 = scmp.eq.s32.totalorder %s28, 1
      %p41 = por %p39, %p40
      %p42 = scmp.ne.s32.totalorder %s33, %s34
      %p43 = scmp.eq.s32.totalorder %s28, 0
      %p44 = por %p42, %p43
      %p45 = scmp.ne.s32.totalorder %s33, %s34
      %p46 = scmp.eq.s32.totalorder %s29, 1
      %p47 = por %p45, %p46
      %p49 = scmp.ne.s32.totalorder %s34, %s48
      %p50 = scmp.eq.s32.totalorder %s29, 0
      %p51 = por %p49, %p50
      %s52 = ssub.s32 %s23, %s30
      %p53 = scmp.eq.s32.totalorder %s52, 0
      %s55 = sadd.s32 %s54, 1
      %s56 = scalar_select %p53, %s54, %s55
      %p59 = pneg %p53
      %p60 = scmp.eq.s32.totalorder %s23, 1
      %p61 = por %p59, %p60
      %p62 = scmp.ne.s32.totalorder %s54, %s57
      %p63 = scmp.eq.s32.totalorder %s23, 0
      %p64 = por %p62, %p63
      %p65 = scmp.ne.s32.totalorder %s54, %s57
      %p66 = scmp.eq.s32.totalorder %s28, 1
      %p67 = por %p65, %p66
      %p68 = scmp.ne.s32.totalorder %s57, %s58
      %p69 = scmp.eq.s32.totalorder %s28, 0
      %p70 = por %p68, %p69
      %p71 = scmp.ne.s32.totalorder %s57, %s58
      %p72 = scmp.eq.s32.totalorder %s29, 1
      %p73 = por %p71, %p72
      %p75 = scmp.ne.s32.totalorder %s58, %s74
      %p76 = scmp.eq.s32.totalorder %s29, 0
      %p77 = por %p75, %p76
      %s79 = sadd.s32 %s78, 1
      %p82 = scmp.eq.s32.totalorder %s23, 1
      %p83 = scmp.ne.s32.totalorder %s78, %s80
      %p84 = scmp.eq.s32.totalorder %s23, 0
      %p85 = por %p83, %p84
      %p86 = scmp.ne.s32.totalorder %s78, %s80
      %p87 = scmp.eq.s32.totalorder %s28, 1
      %p88 = por %p86, %p87
      %p89 = scmp.ne.s32.totalorder %s80, %s81
      %p90 = scmp.eq.s32.totalorder %s28, 0
      %p91 = por %p89, %p90
      %p92 = scmp.ne.s32.totalorder %s80, %s81
      %p93 = scmp.eq.s32.totalorder %s29, 1
      %p94 = por %p92, %p93
      %p96 = scmp.ne.s32.totalorder %s81, %s95
      %p97 = scmp.eq.s32.totalorder %s29, 0
      %p98 = por %p96, %p97
      %s100 = sadd.s32 %s99, 1
      %p103 = scmp.eq.s32.totalorder %s23, 1
      %p104 = scmp.ne.s32.totalorder %s99, %s101
      %p105 = scmp.eq.s32.totalorder %s23, 0
      %p106 = por %p104, %p105
      %p107 = scmp.ne.s32.totalorder %s99, %s101
      %p108 = scmp.eq.s32.totalorder %s28, 1
      %p109 = por %p107, %p108
      %p110 = scmp.ne.s32.totalorder %s101, %s102
      %p111 = scmp.eq.s32.totalorder %s28, 0
      %p112 = por %p110, %p111
      %p113 = scmp.ne.s32.totalorder %s101, %s102
      %p114 = scmp.eq.s32.totalorder %s29, 1
      %p115 = por %p113, %p114
      %p117 = scmp.ne.s32.totalorder %s102, %s116
      %p118 = scmp.eq.s32.totalorder %s29, 0
      %p119 = por %p117, %p118
      %s120 = ssub.s32 %s23, %s30
      %p121 = scmp.eq.s32.totalorder %s120, 0
      %s123 = sadd.s32 %s122, 1
      %s124 = scalar_select %p121, %s122, %s123
      %p127 = pneg %p121
      %p128 = scmp.eq.s32.totalorder %s23, 1
      %p129 = por %p127, %p128
      %p130 = scmp.ne.s32.totalorder %s122, %s125
      %p131 = scmp.eq.s32.totalorder %s23, 0
      %p132 = por %p130, %p131
      %p133 = scmp.ne.s32.totalorder %s122, %s125
      %p134 = scmp.eq.s32.totalorder %s28, 1
      %p135 = por %p133, %p134
      %p136 = scmp.ne.s32.totalorder %s125, %s126
      %p137 = scmp.eq.s32.totalorder %s28, 0
      %p138 = por %p136, %p137
      %p139 = scmp.ne.s32.totalorder %s125, %s126
      %p140 = scmp.eq.s32.totalorder %s29, 1
      %p141 = por %p139, %p140
      %p143 = scmp.ne.s32.totalorder %s126, %s142
      %p144 = scmp.eq.s32.totalorder %s29, 0
      %p145 = por %p143, %p144
      %s146 = ssub.s32 %s23, %s30
      %p147 = scmp.eq.s32.totalorder %s146, 0
      %s149 = sadd.s32 %s148, 1
      %s150 = scalar_select %p147, %s148, %s149
      %p153 = pneg %p147
      %p154 = scmp.eq.s32.totalorder %s23, 1
      %p155 = por %p153, %p154
      %p156 = scmp.ne.s32.totalorder %s148, %s151
      %p157 = scmp.eq.s32.totalorder %s23, 0
      %p158 = por %p156, %p157
      %p159 = scmp.ne.s32.totalorder %s148, %s151
      %p160 = scmp.eq.s32.totalorder %s28, 1
      %p161 = por %p159, %p160
      %p162 = scmp.ne.s32.totalorder %s151, %s152
      %p163 = scmp.eq.s32.totalorder %s28, 0
      %p164 = por %p162, %p163
      %p165 = scmp.ne.s32.totalorder %s151, %s152
      %p166 = scmp.eq.s32.totalorder %s29, 1
      %p167 = por %p165, %p166
      %p169 = scmp.ne.s32.totalorder %s152, %s168
      %p170 = scmp.eq.s32.totalorder %s29, 0
      %p171 = por %p169, %p170
      %p172 = scmp.le.s32.totalorder 1, %s23
      %p173 = scmp.lt.s32.totalorder %s23, 3
      %p174 = pnand %p172, %p173
      %p175 = pneg %p174
      // Predicated region
      $region9: #{tpu_custom_call.1} parent=5 // pred_check
        _
      $region10: #{tpu_custom_call.1} parent=5 // pred_check_branch
        %177 = sbr.rel (%p174) target = $region12
      $region11: #{tpu_custom_call.1} parent=5 // pred_region
        %s178 = ssub.s32 %s23, 1
        // Predicated region
        $region13: #{tpu_custom_call.1} parent=11 // pred_check
          %p179 = pneg %p44
        $region14: #{tpu_custom_call.1} parent=11 // pred_check_branch
          %181 = sbr.rel (%p179) target = $region16
        $region15: #{tpu_custom_call.1} parent=11 // pred_region
          _
        $region16: #{tpu_custom_call.1} parent=11 // pred_fallthru
          _
        // Predicated region
        $region17: #{tpu_custom_call.1} parent=11 // pred_check
          %p182 = pneg %p91
        $region18: #{tpu_custom_call.1} parent=11 // pred_check_branch
          %184 = sbr.rel (%p182) target = $region20
        $region19: #{tpu_custom_call.1} parent=11 // pred_region
          %186 = vsyncadd [#allocation7], 0
          %s188 = sshll.u32 %s2, 4
          %s189 = int_to_ptr.hbm [resolvable:$true] %s188
          %s190 = sshll.u32 [#allocation6], 4
          %s191 = int_to_ptr.vmem [resolvable:$true] %s190
          %193 = dma.hbm_to_vmem [thread:$0]  %s189, 128, %s191, [#allocation7]
        $region20: #{tpu_custom_call.1} parent=11 // pred_fallthru
          _
        // Predicated region
        $region21: #{tpu_custom_call.1} parent=11 // pred_check
          %p194 = pneg %p112
        $region22: #{tpu_custom_call.1} parent=11 // pred_check_branch
          %196 = sbr.rel (%p194) target = $region24
        $region23: #{tpu_custom_call.1} parent=11 // pred_region
          %198 = vsyncadd [#allocation7], 0
          %s199 = sshll.u32 %s3, 4
          %s200 = int_to_ptr.hbm [resolvable:$true] %s199
          %s201 = sshll.u32 [#allocation8], 4
          %s202 = int_to_ptr.vmem [resolvable:$true] %s201
          %207 = dma.hbm_to_vmem [thread:$0]  %s200, 1152, %s202, [#allocation7], 128, 128, 8
        $region24: #{tpu_custom_call.1} parent=11 // pred_fallthru
          _
      $region12: #{tpu_custom_call.1} parent=5 // pred_fallthru
        _
      %p208 = scmp.lt.s32.totalorder %s23, 2
      // Predicated region
      $region25: #{tpu_custom_call.1} parent=5 // pred_check
        %p209 = pneg %p208
      $region26: #{tpu_custom_call.1} parent=5 // pred_check_branch
        %211 = sbr.rel (%p209) target = $region28
      $region27: #{tpu_custom_call.1} parent=5 // pred_region
        // Predicated region
        $region29: #{tpu_custom_call.1} parent=27 // pred_check
          %p212 = pneg %p64
        $region30: #{tpu_custom_call.1} parent=27 // pred_check_branch
          %214 = sbr.rel (%p212) target = $region32
        $region31: #{tpu_custom_call.1} parent=27 // pred_region
          %s215 = sand.u32 %s54, 1
          %s216 = scalar_lea.sflag [#allocation4], %s215
          %s217 = sand.u32 %s54, 1
          %s218 = smul.addr %s217, 256
          %s219 = scalar_lea.vmem [#allocation3], %s218
          %s220 = smul.u32 32, %s23
          %222 = vsyncadd %s216, 0
          %s223 = smul.addr %s220, 8
          %s224 = scalar_lea.hbm %s1, %s223
          %s225 = sshll.u32 %s224, 4
          %s226 = int_to_ptr.hbm [resolvable:$true] %s225
          %s227 = sshll.u32 %s219, 4
          %s228 = int_to_ptr.vmem [resolvable:$true] %s227
          %233 = dma.hbm_to_vmem [thread:$0]  %s226, 4096, %s228, %s216, 128, 128, 8
        $region32: #{tpu_custom_call.1} parent=27 // pred_fallthru
          _
      $region28: #{tpu_custom_call.1} parent=5 // pred_fallthru
        _
      %p234 = scmp.le.s32.totalorder 1, %s23
      %p235 = scmp.lt.s32.totalorder %s23, 3
      %p236 = pnand %p234, %p235
      %p237 = pneg %p236
      // Predicated region
      $region33: #{tpu_custom_call.1} parent=5 // pred_check
        _
      $region34: #{tpu_custom_call.1} parent=5 // pred_check_branch
        %239 = sbr.rel (%p236) target = $region36
      $region35: #{tpu_custom_call.1} parent=5 // pred_region
        %s240 = ssub.s32 %s23, 1
        %s241 = sand.u32 %s57, 1
        %s242 = scalar_lea.sflag [#allocation4], %s241
        %s243 = sand.u32 %s57, 1
        %s244 = smul.addr %s243, 256
        %s245 = scalar_lea.vmem [#allocation3], %s244
        // Predicated region
        $region37: #{tpu_custom_call.1} parent=35 // pred_check
          %p246 = pneg %p70
        $region38: #{tpu_custom_call.1} parent=35 // pred_check_branch
          %248 = sbr.rel (%p246) target = $region40
        $region39: #{tpu_custom_call.1} parent=35 // pred_region
          %250 = dma.done %s242, 4096
        $region40: #{tpu_custom_call.1} parent=35 // pred_fallthru
          _
        // Predicated region
        $region41: #{tpu_custom_call.1} parent=35 // pred_check
          %p251 = pneg %p91
        $region42: #{tpu_custom_call.1} parent=35 // pred_check_branch
          %253 = sbr.rel (%p251) target = $region44
        $region43: #{tpu_custom_call.1} parent=35 // pred_region
          %255 = dma.done [#allocation7], 128
        $region44: #{tpu_custom_call.1} parent=35 // pred_fallthru
          _
        // Predicated region
        $region45: #{tpu_custom_call.1} parent=35 // pred_check
          %p256 = pneg %p112
        $region46: #{tpu_custom_call.1} parent=35 // pred_check_branch
          %258 = sbr.rel (%p256) target = $region48
        $region47: #{tpu_custom_call.1} parent=35 // pred_region
          %260 = dma.done [#allocation7], 1152
        $region48: #{tpu_custom_call.1} parent=35 // pred_fallthru
          _
        %p261 = pneg %p44
        %p262 = pneg %p41
        %s263 = sand.u32 %s57, 1
        %s264 = scalar_lea.sflag [#allocation4], %s263
        %s265 = sand.u32 %s57, 1
        %s266 = smul.addr %s265, 256
        %s267 = scalar_lea.vmem [#allocation3], %s266
        %p268 = pneg %p70
        %p269 = pneg %p67
        %p270 = pneg %p91
        %p271 = pneg %p88
        %p272 = pneg %p112
        %p273 = pneg %p109
        %p274 = pneg %p138
        %p275 = pneg %p135
        %s276 = sand.u32 %s125, 1
        %s277 = scalar_lea.sflag [#allocation5], %s276
        %s278 = sand.u32 %s125, 1
        %s279 = smul.addr %s278, 16
        %s280 = scalar_lea.vmem [#allocation9], %s279
        %p281 = pneg %p164
        %p282 = pneg %p161
        %s283 = sand.u32 %s151, 1
        %s284 = scalar_lea.sflag [#allocation11], %s283
        %s285 = sand.u32 %s151, 1
        %s286 = smul.addr %s285, 128
        %s287 = scalar_lea.vmem [#allocation10], %s286
        %s288 = smul.u32 32, %s28
        %s289 = smul.u32 2, %s28
        %s290 = smul.u32 2, %s28
        %s291 = sld [smem:[#allocation2]]
        %v292 = vld [vmem:[%s245] sm:$0xff]
        %v293 = vld [vmem:[%s245 + $0x8] sm:$0xff]
        %v294 = vld [vmem:[%s245 + $0x10] sm:$0xff]
        %v295 = vld [vmem:[%s245 + $0x18] sm:$0xff]
        %v296 = vld [vmem:[%s245 + $0x20] sm:$0xff]
        %v297 = vld [vmem:[%s245 + $0x28] sm:$0xff]
        %v298 = vld [vmem:[%s245 + $0x30] sm:$0xff]
        %v299 = vld [vmem:[%s245 + $0x38] sm:$0xff]
        %v300 = vld [vmem:[%s245 + $0x40] sm:$0xff]
        %v301 = vld [vmem:[%s245 + $0x48] sm:$0xff]
        %v302 = vld [vmem:[%s245 + $0x50] sm:$0xff]
        %v303 = vld [vmem:[%s245 + $0x58] sm:$0xff]
        %v304 = vld [vmem:[%s245 + $0x60] sm:$0xff]
        %v305 = vld [vmem:[%s245 + $0x68] sm:$0xff]
        %v306 = vld [vmem:[%s245 + $0x70] sm:$0xff]
        %v307 = vld [vmem:[%s245 + $0x78] sm:$0xff]
        %v308 = vld [vmem:[%s245 + $0x80] sm:$0xff]
        %v309 = vld [vmem:[%s245 + $0x88] sm:$0xff]
        %v310 = vld [vmem:[%s245 + $0x90] sm:$0xff]
        %v311 = vld [vmem:[%s245 + $0x98] sm:$0xff]
        %v312 = vld [vmem:[%s245 + $0xa0] sm:$0xff]
        %v313 = vld [vmem:[%s245 + $0xa8] sm:$0xff]
        %v314 = vld [vmem:[%s245 + $0xb0] sm:$0xff]
        %v315 = vld [vmem:[%s245 + $0xb8] sm:$0xff]
        %v316 = vld [vmem:[%s245 + $0xc0] sm:$0xff]
        %v317 = vld [vmem:[%s245 + $0xc8] sm:$0xff]
        %v318 = vld [vmem:[%s245 + $0xd0] sm:$0xff]
        %v319 = vld [vmem:[%s245 + $0xd8] sm:$0xff]
        %v320 = vld [vmem:[%s245 + $0xe0] sm:$0xff]
        %v321 = vld [vmem:[%s245 + $0xe8] sm:$0xff]
        %v322 = vld [vmem:[%s245 + $0xf0] sm:$0xff]
        %v323 = vld [vmem:[%s245 + $0xf8] sm:$0xff]
        %vm324 = vweird.f32 %v292
        %vm325 = vweird.f32 %v293
        %vm326 = vweird.f32 %v294
        %vm327 = vweird.f32 %v295
        %vm328 = vweird.f32 %v296
        %vm329 = vweird.f32 %v297
        %vm330 = vweird.f32 %v298
        %vm331 = vweird.f32 %v299
        %vm332 = vweird.f32 %v300
        %vm333 = vweird.f32 %v301
        %vm334 = vweird.f32 %v302
        %vm335 = vweird.f32 %v303
        %vm336 = vweird.f32 %v304
        %vm337 = vweird.f32 %v305
        %vm338 = vweird.f32 %v306
        %vm339 = vweird.f32 %v307
        %vm340 = vweird.f32 %v308
        %vm341 = vweird.f32 %v309
        %vm342 = vweird.f32 %v310
        %vm343 = vweird.f32 %v311
        %vm344 = vweird.f32 %v312
        %vm345 = vweird.f32 %v313
        %vm346 = vweird.f32 %v314
        %vm347 = vweird.f32 %v315
        %vm348 = vweird.f32 %v316
        %vm349 = vweird.f32 %v317
        %vm350 = vweird.f32 %v318
        %vm351 = vweird.f32 %v319
        %vm352 = vweird.f32 %v320
        %vm353 = vweird.f32 %v321
        %vm354 = vweird.f32 %v322
        %vm355 = vweird.f32 %v323
        %vm356 = vmxor %vm324, 1
        %vm357 = vmxor %vm325, 1
        %vm358 = vmxor %vm326, 1
        %vm359 = vmxor %vm327, 1
        %vm360 = vmxor %vm328, 1
        %vm361 = vmxor %vm329, 1
        %vm362 = vmxor %vm330, 1
        %vm363 = vmxor %vm331, 1
        %vm364 = vmxor %vm332, 1
        %vm365 = vmxor %vm333, 1
        %vm366 = vmxor %vm334, 1
        %vm367 = vmxor %vm335, 1
        %vm368 = vmxor %vm336, 1
        %vm369 = vmxor %vm337, 1
        %vm370 = vmxor %vm338, 1
        %vm371 = vmxor %vm339, 1
        %vm372 = vmxor %vm340, 1
        %vm373 = vmxor %vm341, 1
        %vm374 = vmxor %vm342, 1
        %vm375 = vmxor %vm343, 1
        %vm376 = vmxor %vm344, 1
        %vm377 = vmxor %vm345, 1
        %vm378 = vmxor %vm346, 1
        %vm379 = vmxor %vm347, 1
        %vm380 = vmxor %vm348, 1
        %vm381 = vmxor %vm349, 1
        %vm382 = vmxor %vm350, 1
        %vm383 = vmxor %vm351, 1
        %vm384 = vmxor %vm352, 1
        %vm385 = vmxor %vm353, 1
        %vm386 = vmxor %vm354, 1
        %vm387 = vmxor %vm355, 1
        %v388 = vsel %vm356, 1, 0
        %v389 = vsel %vm357, 1, 0
        %v390 = vsel %vm358, 1, 0
        %v391 = vsel %vm359, 1, 0
        %v392 = vsel %vm360, 1, 0
        %v393 = vsel %vm361, 1, 0
        %v394 = vsel %vm362, 1, 0
        %v395 = vsel %vm363, 1, 0
        %v396 = vsel %vm364, 1, 0
        %v397 = vsel %vm365, 1, 0
        %v398 = vsel %vm366, 1, 0
        %v399 = vsel %vm367, 1, 0
        %v400 = vsel %vm368, 1, 0
        %v401 = vsel %vm369, 1, 0
        %v402 = vsel %vm370, 1, 0
        %v403 = vsel %vm371, 1, 0
        %v404 = vsel %vm372, 1, 0
        %v405 = vsel %vm373, 1, 0
        %v406 = vsel %vm374, 1, 0
        %v407 = vsel %vm375, 1, 0
        %v408 = vsel %vm376, 1, 0
        %v409 = vsel %vm377, 1, 0
        %v410 = vsel %vm378, 1, 0
        %v411 = vsel %vm379, 1, 0
        %v412 = vsel %vm380, 1, 0
        %v413 = vsel %vm381, 1, 0
        %v414 = vsel %vm382, 1, 0
        %v415 = vsel %vm383, 1, 0
        %v416 = vsel %vm384, 1, 0
        %v417 = vsel %vm385, 1, 0
        %v418 = vsel %vm386, 1, 0
        %v419 = vsel %vm387, 1, 0
        %v420 = vcvt.s32.f32 %v388
        %v421 = vcvt.s32.f32 %v389
        %v422 = vcvt.s32.f32 %v390
        %v423 = vcvt.s32.f32 %v391
        %v424 = vcvt.s32.f32 %v392
        %v425 = vcvt.s32.f32 %v393
        %v426 = vcvt.s32.f32 %v394
        %v427 = vcvt.s32.f32 %v395
        %v428 = vcvt.s32.f32 %v396
        %v429 = vcvt.s32.f32 %v397
        %v430 = vcvt.s32.f32 %v398
        %v431 = vcvt.s32.f32 %v399
        %v432 = vcvt.s32.f32 %v400
        %v433 = vcvt.s32.f32 %v401
        %v434 = vcvt.s32.f32 %v402
        %v435 = vcvt.s32.f32 %v403
        %v436 = vcvt.s32.f32 %v404
        %v437 = vcvt.s32.f32 %v405
        %v438 = vcvt.s32.f32 %v406
        %v439 = vcvt.s32.f32 %v407
        %v440 = vcvt.s32.f32 %v408
        %v441 = vcvt.s32.f32 %v409
        %v442 = vcvt.s32.f32 %v410
        %v443 = vcvt.s32.f32 %v411
        %v444 = vcvt.s32.f32 %v412
        %v445 = vcvt.s32.f32 %v413
        %v446 = vcvt.s32.f32 %v414
        %v447 = vcvt.s32.f32 %v415
        %v448 = vcvt.s32.f32 %v416
        %v449 = vcvt.s32.f32 %v417
        %v450 = vcvt.s32.f32 %v418
        %v451 = vcvt.s32.f32 %v419
        %v452 = vsel %vm356, %v292, 0.0
        %v453 = vsel %vm357, %v293, 0.0
        %v454 = vsel %vm358, %v294, 0.0
        %v455 = vsel %vm359, %v295, 0.0
        %v456 = vsel %vm360, %v296, 0.0
        %v457 = vsel %vm361, %v297, 0.0
        %v458 = vsel %vm362, %v298, 0.0
        %v459 = vsel %vm363, %v299, 0.0
        %v460 = vsel %vm364, %v300, 0.0
        %v461 = vsel %vm365, %v301, 0.0
        %v462 = vsel %vm366, %v302, 0.0
        %v463 = vsel %vm367, %v303, 0.0
        %v464 = vsel %vm368, %v304, 0.0
        %v465 = vsel %vm369, %v305, 0.0
        %v466 = vsel %vm370, %v306, 0.0
        %v467 = vsel %vm371, %v307, 0.0
        %v468 = vsel %vm372, %v308, 0.0
        %v469 = vsel %vm373, %v309, 0.0
        %v470 = vsel %vm374, %v310, 0.0
        %v471 = vsel %vm375, %v311, 0.0
        %v472 = vsel %vm376, %v312, 0.0
        %v473 = vsel %vm377, %v313, 0.0
        %v474 = vsel %vm378, %v314, 0.0
        %v475 = vsel %vm379, %v315, 0.0
        %v476 = vsel %vm380, %v316, 0.0
        %v477 = vsel %vm381, %v317, 0.0
        %v478 = vsel %vm382, %v318, 0.0
        %v479 = vsel %vm383, %v319, 0.0
        %v480 = vsel %vm384, %v320, 0.0
        %v481 = vsel %vm385, %v321, 0.0
        %v482 = vsel %vm386, %v322, 0.0
        %v483 = vsel %vm387, %v323, 0.0
        %v484 = vld [vmem:[#allocation8] sm:$0xff]
        %v485 = vld [vmem:[#allocation8 + $0x8] sm:$0xff]
        %v486 = vld [vmem:[#allocation8 + $0x10] sm:$0xff]
        %v487 = vld [vmem:[#allocation8 + $0x18] sm:$0xff]
        %v488 = vld [vmem:[#allocation8 + $0x20] sm:$0xff]
        %v489 = vld [vmem:[#allocation8 + $0x28] sm:$0xff]
        %v490 = vld [vmem:[#allocation8 + $0x30] sm:$0xff]
        %v491 = vld [vmem:[#allocation8 + $0x38] sm:$0xff]
        %v492 = vld [vmem:[#allocation8 + $0x40] sm:$0xff]
        %493 = vmatpush.xpose.msra.mxu0 %v435
        %494 = vmatpush.xpose.msra.mxu0 %v434
        %495 = vmatpush.xpose.msra.mxu0 %v433
        %496 = vmatpush.xpose.msra.mxu0 %v432
        %497 = vmatpush.xpose.msra.mxu0 %v431
        %498 = vmatpush.xpose.msra.mxu0 %v430
        %499 = vmatpush.xpose.msra.mxu0 %v429
        %500 = vmatpush.xpose.msra.mxu0 %v428
        %501 = vmatpush.xpose.msra.mxu0 %v427
        %502 = vmatpush.xpose.msra.mxu0 %v426
        %503 = vmatpush.xpose.msra.mxu0 %v425
        %504 = vmatpush.xpose.msra.mxu0 %v424
        %505 = vmatpush.xpose.msra.mxu0 %v423
        %506 = vmatpush.xpose.msra.mxu0 %v422
        %507 = vmatpush.xpose.msra.mxu0 %v421
        %508 = vmatpush.xpose.msra.mxu0 %v420
        %509 = vmatmul.f32.gmra.mxu0 %v484
        %v510 = vpop.f32.mrf.mxu0
        %v511 = vadd.f32 0.0, %v510
        %512 = vmatmul.f32.gmra.mxu0 %v485
        %v513 = vpop.f32.mrf.mxu0
        %v514 = vadd.f32 0.0, %v513
        %515 = vmatmul.f32.gmra.mxu0 %v486
        %v516 = vpop.f32.mrf.mxu0
        %v517 = vadd.f32 0.0, %v516
        %518 = vmatmul.f32.gmra.mxu0 %v487
        %v519 = vpop.f32.mrf.mxu0
        %v520 = vadd.f32 0.0, %v519
        %521 = vmatmul.f32.gmra.mxu0 %v488
        %v522 = vpop.f32.mrf.mxu0
        %v523 = vadd.f32 0.0, %v522
        %524 = vmatmul.f32.gmra.mxu0 %v489
        %v525 = vpop.f32.mrf.mxu0
        %v526 = vadd.f32 0.0, %v525
        %527 = vmatmul.f32.gmra.mxu0 %v490
        %v528 = vpop.f32.mrf.mxu0
        %v529 = vadd.f32 0.0, %v528
        %530 = vmatmul.f32.gmra.mxu0 %v491
        %v531 = vpop.f32.mrf.mxu0
        %v532 = vadd.f32 0.0, %v531
        %533 = vmatmul.f32.gmra.mxu0 %v492
        %v534 = vpop.f32.mrf.mxu0
        %v535 = vadd.f32 0.0, %v534
        %536 = vdwg.mxu0
        %537 = vmatpush.xpose.msra.mxu0 %v451
        %538 = vmatpush.xpose.msra.mxu0 %v450
        %539 = vmatpush.xpose.msra.mxu0 %v449
        %540 = vmatpush.xpose.msra.mxu0 %v448
        %541 = vmatpush.xpose.msra.mxu0 %v447
        %542 = vmatpush.xpose.msra.mxu0 %v446
        %543 = vmatpush.xpose.msra.mxu0 %v445
        %544 = vmatpush.xpose.msra.mxu0 %v444
        %545 = vmatpush.xpose.msra.mxu0 %v443
        %546 = vmatpush.xpose.msra.mxu0 %v442
        %547 = vmatpush.xpose.msra.mxu0 %v441
        %548 = vmatpush.xpose.msra.mxu0 %v440
        %549 = vmatpush.xpose.msra.mxu0 %v439
        %550 = vmatpush.xpose.msra.mxu0 %v438
        %551 = vmatpush.xpose.msra.mxu0 %v437
        %552 = vmatpush.xpose.msra.mxu0 %v436
        %553 = vmatmul.f32.gmra.mxu0 %v484
        %v554 = vpop.f32.mrf.mxu0
        %v555 = vadd.f32 0.0, %v554
        %556 = vmatmul.f32.gmra.mxu0 %v485
        %v557 = vpop.f32.mrf.mxu0
        %v558 = vadd.f32 0.0, %v557
        %559 = vmatmul.f32.gmra.mxu0 %v486
        %v560 = vpop.f32.mrf.mxu0
        %v561 = vadd.f32 0.0, %v560
        %562 = vmatmul.f32.gmra.mxu0 %v487
        %v563 = vpop.f32.mrf.mxu0
        %v564 = vadd.f32 0.0, %v563
        %565 = vmatmul.f32.gmra.mxu0 %v488
        %v566 = vpop.f32.mrf.mxu0
        %v567 = vadd.f32 0.0, %v566
        %568 = vmatmul.f32.gmra.mxu0 %v489
        %v569 = vpop.f32.mrf.mxu0
        %v570 = vadd.f32 0.0, %v569
        %571 = vmatmul.f32.gmra.mxu0 %v490
        %v572 = vpop.f32.mrf.mxu0
        %v573 = vadd.f32 0.0, %v572
        %574 = vmatmul.f32.gmra.mxu0 %v491
        %v575 = vpop.f32.mrf.mxu0
        %v576 = vadd.f32 0.0, %v575
        %577 = vmatmul.f32.gmra.mxu0 %v492
        %v578 = vpop.f32.mrf.mxu0
        %v579 = vadd.f32 0.0, %v578
        %580 = vdwg.mxu0
        %v581 = vld [vmem:[#allocation6] sm:$0xff]
        %582 = vmatpush.xpose.msra.mxu0 %v467
        %583 = vmatpush.xpose.msra.mxu0 %v466
        %584 = vmatpush.xpose.msra.mxu0 %v465
        %585 = vmatpush.xpose.msra.mxu0 %v464
        %586 = vmatpush.xpose.msra.mxu0 %v463
        %587 = vmatpush.xpose.msra.mxu0 %v462
        %588 = vmatpush.xpose.msra.mxu0 %v461
        %589 = vmatpush.xpose.msra.mxu0 %v460
        %590 = vmatpush.xpose.msra.mxu0 %v459
        %591 = vmatpush.xpose.msra.mxu0 %v458
        %592 = vmatpush.xpose.msra.mxu0 %v457
        %593 = vmatpush.xpose.msra.mxu0 %v456
        %594 = vmatpush.xpose.msra.mxu0 %v455
        %595 = vmatpush.xpose.msra.mxu0 %v454
        %596 = vmatpush.xpose.msra.mxu0 %v453
        %597 = vmatpush.xpose.msra.mxu0 %v452
        %598 = vmatmul.f32.gmra.mxu0 %v581
        %v599 = vpop.f32.mrf.mxu0
        %v600 = vadd.f32 0.0, %v599
        %601 = vdwg.mxu0
        %602 = vmatpush.xpose.msra.mxu0 %v483
        %603 = vmatpush.xpose.msra.mxu0 %v482
        %604 = vmatpush.xpose.msra.mxu0 %v481
        %605 = vmatpush.xpose.msra.mxu0 %v480
        %606 = vmatpush.xpose.msra.mxu0 %v479
        %607 = vmatpush.xpose.msra.mxu0 %v478
        %608 = vmatpush.xpose.msra.mxu0 %v477
        %609 = vmatpush.xpose.msra.mxu0 %v476
        %610 = vmatpush.xpose.msra.mxu0 %v475
        %611 = vmatpush.xpose.msra.mxu0 %v474
        %612 = vmatpush.xpose.msra.mxu0 %v473
        %613 = vmatpush.xpose.msra.mxu0 %v472
        %614 = vmatpush.xpose.msra.mxu0 %v471
        %615 = vmatpush.xpose.msra.mxu0 %v470
        %616 = vmatpush.xpose.msra.mxu0 %v469
        %617 = vmatpush.xpose.msra.mxu0 %v468
        %618 = vmatmul.f32.gmra.mxu0 %v581
        %v619 = vpop.f32.mrf.mxu0
        %v620 = vadd.f32 0.0, %v619
        %621 = vdwg.mxu0
        %622 = vst [vmem:[%s287] sm:$0xff] %v511
        %623 = vst [vmem:[%s287 + $0x8] sm:$0xff] %v555
        %624 = vst [vmem:[%s287 + $0x10] sm:$0xff] %v514
        %625 = vst [vmem:[%s287 + $0x18] sm:$0xff] %v558
        %626 = vst [vmem:[%s287 + $0x20] sm:$0xff] %v517
        %627 = vst [vmem:[%s287 + $0x28] sm:$0xff] %v561
        %628 = vst [vmem:[%s287 + $0x30] sm:$0xff] %v520
        %629 = vst [vmem:[%s287 + $0x38] sm:$0xff] %v564
        %630 = vst [vmem:[%s287 + $0x40] sm:$0xff] %v523
        %631 = vst [vmem:[%s287 + $0x48] sm:$0xff] %v567
        %632 = vst [vmem:[%s287 + $0x50] sm:$0xff] %v526
        %633 = vst [vmem:[%s287 + $0x58] sm:$0xff] %v570
        %634 = vst [vmem:[%s287 + $0x60] sm:$0xff] %v529
        %635 = vst [vmem:[%s287 + $0x68] sm:$0xff] %v573
        %636 = vst [vmem:[%s287 + $0x70] sm:$0xff] %v532
        %637 = vst [vmem:[%s287 + $0x78] sm:$0xff] %v576
        %v638 = vsub.f32 %v600, %v535
        %v639 = vsub.f32 %v620, %v579
        %640 = vst [vmem:[%s280] sm:$0xff] %v638
        %641 = vst [vmem:[%s280 + $0x8] sm:$0xff] %v639
        %v642 = vlaneseq
        %v643 = vshrl.u32 %v642, 7
        %vm644 = vcmp.eq.s32.totalorder %v643, 0
        %vm645 = vcmp.eq.s32.totalorder %v643, 1
        %vm646 = vcmp.eq.s32.totalorder %v643, 2
        %vm647 = vcmp.eq.s32.totalorder %v643, 3
        %vm648 = vcmp.eq.s32.totalorder %v643, 4
        %vm649 = vcmp.eq.s32.totalorder %v643, 5
        %vm650 = vcmp.eq.s32.totalorder %v643, 6
        %vm651 = vcmp.eq.s32.totalorder %v643, 7
        %v652 = vsel %vm644, 1, 0
        %v653 = vsel %vm645, 1, 0
        %v654 = vsel %vm646, 1, 0
        %v655 = vsel %vm647, 1, 0
        %v656 = vsel %vm648, 1, 0
        %v657 = vsel %vm649, 1, 0
        %v658 = vsel %vm650, 1, 0
        %v659 = vsel %vm651, 1, 0
        %v660 = vcvt.s32.f32 %v652
        %v661 = vcvt.s32.f32 %v653
        %v662 = vcvt.s32.f32 %v654
        %v663 = vcvt.s32.f32 %v655
        %v664 = vcvt.s32.f32 %v656
        %v665 = vcvt.s32.f32 %v657
        %v666 = vcvt.s32.f32 %v658
        %v667 = vcvt.s32.f32 %v659
        %v668 = vstv %s291
        %v669 = vmul.f32 %v668, %v660
        %v670 = vmul.f32 %v668, %v661
        %v671 = vmul.f32 %v668, %v662
        %v672 = vmul.f32 %v668, %v663
        %v673 = vmul.f32 %v668, %v664
        %v674 = vmul.f32 %v668, %v665
        %v675 = vmul.f32 %v668, %v666
        %v676 = vmul.f32 %v668, %v667
        loop: start=0, step=1, limit=2
        $region49: #{tpu_custom_call.1} parent=35 // loop_pre_header
          _
        $region50: #{tpu_custom_call.1} parent=35 // loop_header
          %s678 = sphi 0, %s682
          %p679 = scmp.ge.s32.totalorder %s678, 2
        $region51: #{tpu_custom_call.1} parent=35 // loop_header_branch
          %681 = sbr.rel (%p679) target = $region55
        $region52: #{tpu_custom_call.1} parent=35 // loop_body
          %s683 = smul.u32 %s678, 128
          %s684 = sshra.s32 %s683, 7
          %s685 = sand.u32 %s683, 127
          %s686 = smul.addr %s684, 8
          %s687 = scalar_lea.vmem %s287, %s686 [#allocation10]
          %v688 = vld [vmem:[%s687] sm:$0xff]
          %v689 = vld [vmem:[%s687 + $0x10] sm:$0xff]
          %v690 = vld [vmem:[%s687 + $0x20] sm:$0xff]
          %v691 = vld [vmem:[%s687 + $0x30] sm:$0xff]
          %v692 = vld [vmem:[%s687 + $0x40] sm:$0xff]
          %v693 = vld [vmem:[%s687 + $0x50] sm:$0xff]
          %v694 = vld [vmem:[%s687 + $0x60] sm:$0xff]
          %v695 = vld [vmem:[%s687 + $0x70] sm:$0xff]
          %v696 = vadd.f32 %v688, %v669
          %v697 = vadd.f32 %v689, %v670
          %v698 = vadd.f32 %v690, %v671
          %v699 = vadd.f32 %v691, %v672
          %v700 = vadd.f32 %v692, %v673
          %v701 = vadd.f32 %v693, %v674
          %v702 = vadd.f32 %v694, %v675
          %v703 = vadd.f32 %v695, %v676
          %s704 = smul.addr %s684, 8
          %s705 = scalar_lea.vmem %s280, %s704 [#allocation9]
          %v706 = vld [vmem:[%s705] sm:$0xff]
          %v707 = vrcp.pop %v696
          %v708 = vmul.f32 %v696, %v707
          %v709 = vsub.f32 2.0, %v708
          %v710 = vmul.f32 %v707, %v709
          %v711 = vperm.slane %v710, 0
          %v712 = vmul.f32 %v696, %v711
          %v713 = vmul.f32 %v660, %v711
          %v715 = vrot.slane %v660, 1
          %v716 = vrot.slane %v660, 2
          %v717 = vrot.slane %v660, 3
          %v718 = vrot.slane %v660, 4
          %v719 = vrot.slane %v660, 5
          %v720 = vrot.slane %v660, 6
          %v721 = vrot.slane %v660, 7
          %v730 = vsub.f32 %v696, %v660
          %v731 = vsub.f32 %v697, %v715
          %v732 = vsub.f32 %v698, %v716
          %v733 = vsub.f32 %v699, %v717
          %v734 = vsub.f32 %v700, %v718
          %v735 = vsub.f32 %v701, %v719
          %v736 = vsub.f32 %v702, %v720
          %v737 = vsub.f32 %v703, %v721
          %v738 = vperm.slane %v730, 0
          %v739 = vperm.slane %v731, 0
          %v740 = vperm.slane %v732, 0
          %v741 = vperm.slane %v733, 0
          %v742 = vperm.slane %v734, 0
          %v743 = vperm.slane %v735, 0
          %v744 = vperm.slane %v736, 0
          %v745 = vperm.slane %v737, 0
          %v746 = vmul.f32 %v738, %v712
          %v747 = vmul.f32 %v739, %v712
          %v748 = vmul.f32 %v740, %v712
          %v749 = vmul.f32 %v741, %v712
          %v750 = vmul.f32 %v742, %v712
          %v751 = vmul.f32 %v743, %v712
          %v752 = vmul.f32 %v744, %v712
          %v753 = vmul.f32 %v745, %v712
          %v754 = vsub.f32 %v696, %v746
          %v755 = vsub.f32 %v697, %v747
          %v756 = vsub.f32 %v698, %v748
          %v757 = vsub.f32 %v699, %v749
          %v758 = vsub.f32 %v700, %v750
          %v759 = vsub.f32 %v701, %v751
          %v760 = vsub.f32 %v702, %v752
          %v761 = vsub.f32 %v703, %v753
          %v762 = vmul.f32 %v738, %v713
          %v763 = vmul.f32 %v739, %v713
          %v764 = vmul.f32 %v740, %v713
          %v765 = vmul.f32 %v741, %v713
          %v766 = vmul.f32 %v742, %v713
          %v767 = vmul.f32 %v743, %v713
          %v768 = vmul.f32 %v744, %v713
          %v769 = vmul.f32 %v745, %v713
          %v770 = vsub.f32 %v660, %v762
          %v771 = vsub.f32 %v661, %v763
          %v772 = vsub.f32 %v662, %v764
          %v773 = vsub.f32 %v663, %v765
          %v774 = vsub.f32 %v664, %v766
          %v775 = vsub.f32 %v665, %v767
          %v776 = vsub.f32 %v666, %v768
          %v777 = vsub.f32 %v667, %v769
          %v778 = vrcp.pop %v755
          %v779 = vmul.f32 %v755, %v778
          %v780 = vsub.f32 2.0, %v779
          %v781 = vmul.f32 %v778, %v780
          %v782 = vperm.slane %v781, 1
          %v783 = vmul.f32 %v755, %v782
          %v784 = vmul.f32 %v771, %v782
          %v786 = vrot.slane %v661, 7
          %v787 = vrot.slane %v661, 1
          %v788 = vrot.slane %v661, 2
          %v789 = vrot.slane %v661, 3
          %v790 = vrot.slane %v661, 4
          %v791 = vrot.slane %v661, 5
          %v792 = vrot.slane %v661, 6
          %v801 = vsub.f32 %v754, %v786
          %v802 = vsub.f32 %v755, %v661
          %v803 = vsub.f32 %v756, %v787
          %v804 = vsub.f32 %v757, %v788
          %v805 = vsub.f32 %v758, %v789
          %v806 = vsub.f32 %v759, %v790
          %v807 = vsub.f32 %v760, %v791
          %v808 = vsub.f32 %v761, %v792
          %v809 = vperm.slane %v801, 1
          %v810 = vperm.slane %v802, 1
          %v811 = vperm.slane %v803, 1
          %v812 = vperm.slane %v804, 1
          %v813 = vperm.slane %v805, 1
          %v814 = vperm.slane %v806, 1
          %v815 = vperm.slane %v807, 1
          %v816 = vperm.slane %v808, 1
          %v817 = vmul.f32 %v809, %v783
          %v818 = vmul.f32 %v810, %v783
          %v819 = vmul.f32 %v811, %v783
          %v820 = vmul.f32 %v812, %v783
          %v821 = vmul.f32 %v813, %v783
          %v822 = vmul.f32 %v814, %v783
          %v823 = vmul.f32 %v815, %v783
          %v824 = vmul.f32 %v816, %v783
          %v825 = vsub.f32 %v754, %v817
          %v826 = vsub.f32 %v755, %v818
          %v827 = vsub.f32 %v756, %v819
          %v828 = vsub.f32 %v757, %v820
          %v829 = vsub.f32 %v758, %v821
          %v830 = vsub.f32 %v759, %v822
          %v831 = vsub.f32 %v760, %v823
          %v832 = vsub.f32 %v761, %v824
          %v833 = vmul.f32 %v809, %v784
          %v834 = vmul.f32 %v810, %v784
          %v835 = vmul.f32 %v811, %v784
          %v836 = vmul.f32 %v812, %v784
          %v837 = vmul.f32 %v813, %v784
          %v838 = vmul.f32 %v814, %v784
          %v839 = vmul.f32 %v815, %v784
          %v840 = vmul.f32 %v816, %v784
          %v841 = vsub.f32 %v770, %v833
          %v842 = vsub.f32 %v771, %v834
          %v843 = vsub.f32 %v772, %v835
          %v844 = vsub.f32 %v773, %v836
          %v845 = vsub.f32 %v774, %v837
          %v846 = vsub.f32 %v775, %v838
          %v847 = vsub.f32 %v776, %v839
          %v848 = vsub.f32 %v777, %v840
          %v849 = vrcp.pop %v827
          %v850 = vmul.f32 %v827, %v849
          %v851 = vsub.f32 2.0, %v850
          %v852 = vmul.f32 %v849, %v851
          %v853 = vperm.slane %v852, 2
          %v854 = vmul.f32 %v827, %v853
          %v855 = vmul.f32 %v843, %v853
          %v857 = vrot.slane %v662, 6
          %v858 = vrot.slane %v662, 7
          %v859 = vrot.slane %v662, 1
          %v860 = vrot.slane %v662, 2
          %v861 = vrot.slane %v662, 3
          %v862 = vrot.slane %v662, 4
          %v863 = vrot.slane %v662, 5
          %v872 = vsub.f32 %v825, %v857
          %v873 = vsub.f32 %v826, %v858
          %v874 = vsub.f32 %v827, %v662
          %v875 = vsub.f32 %v828, %v859
          %v876 = vsub.f32 %v829, %v860
          %v877 = vsub.f32 %v830, %v861
          %v878 = vsub.f32 %v831, %v862
          %v879 = vsub.f32 %v832, %v863
          %v880 = vperm.slane %v872, 2
          %v881 = vperm.slane %v873, 2
          %v882 = vperm.slane %v874, 2
          %v883 = vperm.slane %v875, 2
          %v884 = vperm.slane %v876, 2
          %v885 = vperm.slane %v877, 2
          %v886 = vperm.slane %v878, 2
          %v887 = vperm.slane %v879, 2
          %v888 = vmul.f32 %v880, %v854
          %v889 = vmul.f32 %v881, %v854
          %v890 = vmul.f32 %v882, %v854
          %v891 = vmul.f32 %v883, %v854
          %v892 = vmul.f32 %v884, %v854
          %v893 = vmul.f32 %v885, %v854
          %v894 = vmul.f32 %v886, %v854
          %v895 = vmul.f32 %v887, %v854
          %v896 = vsub.f32 %v825, %v888
          %v897 = vsub.f32 %v826, %v889
          %v898 = vsub.f32 %v827, %v890
          %v899 = vsub.f32 %v828, %v891
          %v900 = vsub.f32 %v829, %v892
          %v901 = vsub.f32 %v830, %v893
          %v902 = vsub.f32 %v831, %v894
          %v903 = vsub.f32 %v832, %v895
          %v904 = vmul.f32 %v880, %v855
          %v905 = vmul.f32 %v881, %v855
          %v906 = vmul.f32 %v882, %v855
          %v907 = vmul.f32 %v883, %v855
          %v908 = vmul.f32 %v884, %v855
          %v909 = vmul.f32 %v885, %v855
          %v910 = vmul.f32 %v886, %v855
          %v911 = vmul.f32 %v887, %v855
          %v912 = vsub.f32 %v841, %v904
          %v913 = vsub.f32 %v842, %v905
          %v914 = vsub.f32 %v843, %v906
          %v915 = vsub.f32 %v844, %v907
          %v916 = vsub.f32 %v845, %v908
          %v917 = vsub.f32 %v846, %v909
          %v918 = vsub.f32 %v847, %v910
          %v919 = vsub.f32 %v848, %v911
          %v920 = vrcp.pop %v899
          %v921 = vmul.f32 %v899, %v920
          %v922 = vsub.f32 2.0, %v921
          %v923 = vmul.f32 %v920, %v922
          %v924 = vperm.slane %v923, 3
          %v925 = vmul.f32 %v899, %v924
          %v926 = vmul.f32 %v915, %v924
          %v928 = vrot.slane %v663, 5
          %v929 = vrot.slane %v663, 6
          %v930 = vrot.slane %v663, 7
          %v931 = vrot.slane %v663, 1
          %v932 = vrot.slane %v663, 2
          %v933 = vrot.slane %v663, 3
          %v934 = vrot.slane %v663, 4
          %v943 = vsub.f32 %v896, %v928
          %v944 = vsub.f32 %v897, %v929
          %v945 = vsub.f32 %v898, %v930
          %v946 = vsub.f32 %v899, %v663
          %v947 = vsub.f32 %v900, %v931
          %v948 = vsub.f32 %v901, %v932
          %v949 = vsub.f32 %v902, %v933
          %v950 = vsub.f32 %v903, %v934
          %v951 = vperm.slane %v943, 3
          %v952 = vperm.slane %v944, 3
          %v953 = vperm.slane %v945, 3
          %v954 = vperm.slane %v946, 3
          %v955 = vperm.slane %v947, 3
          %v956 = vperm.slane %v948, 3
          %v957 = vperm.slane %v949, 3
          %v958 = vperm.slane %v950, 3
          %v959 = vmul.f32 %v951, %v925
          %v960 = vmul.f32 %v952, %v925
          %v961 = vmul.f32 %v953, %v925
          %v962 = vmul.f32 %v954, %v925
          %v963 = vmul.f32 %v955, %v925
          %v964 = vmul.f32 %v956, %v925
          %v965 = vmul.f32 %v957, %v925
          %v966 = vmul.f32 %v958, %v925
          %v967 = vsub.f32 %v896, %v959
          %v968 = vsub.f32 %v897, %v960
          %v969 = vsub.f32 %v898, %v961
          %v970 = vsub.f32 %v899, %v962
          %v971 = vsub.f32 %v900, %v963
          %v972 = vsub.f32 %v901, %v964
          %v973 = vsub.f32 %v902, %v965
          %v974 = vsub.f32 %v903, %v966
          %v975 = vmul.f32 %v951, %v926
          %v976 = vmul.f32 %v952, %v926
          %v977 = vmul.f32 %v953, %v926
          %v978 = vmul.f32 %v954, %v926
          %v979 = vmul.f32 %v955, %v926
          %v980 = vmul.f32 %v956, %v926
          %v981 = vmul.f32 %v957, %v926
          %v982 = vmul.f32 %v958, %v926
          %v983 = vsub.f32 %v912, %v975
          %v984 = vsub.f32 %v913, %v976
          %v985 = vsub.f32 %v914, %v977
          %v986 = vsub.f32 %v915, %v978
          %v987 = vsub.f32 %v916, %v979
          %v988 = vsub.f32 %v917, %v980
          %v989 = vsub.f32 %v918, %v981
          %v990 = vsub.f32 %v919, %v982
          %v991 = vrcp.pop %v971
          %v992 = vmul.f32 %v971, %v991
          %v993 = vsub.f32 2.0, %v992
          %v994 = vmul.f32 %v991, %v993
          %v995 = vperm.slane %v994, 4
          %v996 = vmul.f32 %v971, %v995
          %v997 = vmul.f32 %v987, %v995
          %v999 = vrot.slane %v664, 4
          %v1000 = vrot.slane %v664, 5
          %v1001 = vrot.slane %v664, 6
          %v1002 = vrot.slane %v664, 7
          %v1003 = vrot.slane %v664, 1
          %v1004 = vrot.slane %v664, 2
          %v1005 = vrot.slane %v664, 3
          %v1014 = vsub.f32 %v967, %v999
          %v1015 = vsub.f32 %v968, %v1000
          %v1016 = vsub.f32 %v969, %v1001
          %v1017 = vsub.f32 %v970, %v1002
          %v1018 = vsub.f32 %v971, %v664
          %v1019 = vsub.f32 %v972, %v1003
          %v1020 = vsub.f32 %v973, %v1004
          %v1021 = vsub.f32 %v974, %v1005
          %v1022 = vperm.slane %v1014, 4
          %v1023 = vperm.slane %v1015, 4
          %v1024 = vperm.slane %v1016, 4
          %v1025 = vperm.slane %v1017, 4
          %v1026 = vperm.slane %v1018, 4
          %v1027 = vperm.slane %v1019, 4
          %v1028 = vperm.slane %v1020, 4
          %v1029 = vperm.slane %v1021, 4
          %v1030 = vmul.f32 %v1022, %v996
          %v1031 = vmul.f32 %v1023, %v996
          %v1032 = vmul.f32 %v1024, %v996
          %v1033 = vmul.f32 %v1025, %v996
          %v1034 = vmul.f32 %v1026, %v996
          %v1035 = vmul.f32 %v1027, %v996
          %v1036 = vmul.f32 %v1028, %v996
          %v1037 = vmul.f32 %v1029, %v996
          %v1038 = vsub.f32 %v967, %v1030
          %v1039 = vsub.f32 %v968, %v1031
          %v1040 = vsub.f32 %v969, %v1032
          %v1041 = vsub.f32 %v970, %v1033
          %v1042 = vsub.f32 %v971, %v1034
          %v1043 = vsub.f32 %v972, %v1035
          %v1044 = vsub.f32 %v973, %v1036
          %v1045 = vsub.f32 %v974, %v1037
          %v1046 = vmul.f32 %v1022, %v997
          %v1047 = vmul.f32 %v1023, %v997
          %v1048 = vmul.f32 %v1024, %v997
          %v1049 = vmul.f32 %v1025, %v997
          %v1050 = vmul.f32 %v1026, %v997
          %v1051 = vmul.f32 %v1027, %v997
          %v1052 = vmul.f32 %v1028, %v997
          %v1053 = vmul.f32 %v1029, %v997
          %v1054 = vsub.f32 %v983, %v1046
          %v1055 = vsub.f32 %v984, %v1047
          %v1056 = vsub.f32 %v985, %v1048
          %v1057 = vsub.f32 %v986, %v1049
          %v1058 = vsub.f32 %v987, %v1050
          %v1059 = vsub.f32 %v988, %v1051
          %v1060 = vsub.f32 %v989, %v1052
          %v1061 = vsub.f32 %v990, %v1053
          %v1062 = vrcp.pop %v1043
          %v1063 = vmul.f32 %v1043, %v1062
          %v1064 = vsub.f32 2.0, %v1063
          %v1065 = vmul.f32 %v1062, %v1064
          %v1066 = vperm.slane %v1065, 5
          %v1067 = vmul.f32 %v1043, %v1066
          %v1068 = vmul.f32 %v1059, %v1066
          %v1070 = vrot.slane %v665, 3
          %v1071 = vrot.slane %v665, 4
          %v1072 = vrot.slane %v665, 5
          %v1073 = vrot.slane %v665, 6
          %v1074 = vrot.slane %v665, 7
          %v1075 = vrot.slane %v665, 1
          %v1076 = vrot.slane %v665, 2
          %v1085 = vsub.f32 %v1038, %v1070
          %v1086 = vsub.f32 %v1039, %v1071
          %v1087 = vsub.f32 %v1040, %v1072
          %v1088 = vsub.f32 %v1041, %v1073
          %v1089 = vsub.f32 %v1042, %v1074
          %v1090 = vsub.f32 %v1043, %v665
          %v1091 = vsub.f32 %v1044, %v1075
          %v1092 = vsub.f32 %v1045, %v1076
          %v1093 = vperm.slane %v1085, 5
          %v1094 = vperm.slane %v1086, 5
          %v1095 = vperm.slane %v1087, 5
          %v1096 = vperm.slane %v1088, 5
          %v1097 = vperm.slane %v1089, 5
          %v1098 = vperm.slane %v1090, 5
          %v1099 = vperm.slane %v1091, 5
          %v1100 = vperm.slane %v1092, 5
          %v1101 = vmul.f32 %v1093, %v1067
          %v1102 = vmul.f32 %v1094, %v1067
          %v1103 = vmul.f32 %v1095, %v1067
          %v1104 = vmul.f32 %v1096, %v1067
          %v1105 = vmul.f32 %v1097, %v1067
          %v1106 = vmul.f32 %v1098, %v1067
          %v1107 = vmul.f32 %v1099, %v1067
          %v1108 = vmul.f32 %v1100, %v1067
          %v1109 = vsub.f32 %v1038, %v1101
          %v1110 = vsub.f32 %v1039, %v1102
          %v1111 = vsub.f32 %v1040, %v1103
          %v1112 = vsub.f32 %v1041, %v1104
          %v1113 = vsub.f32 %v1042, %v1105
          %v1114 = vsub.f32 %v1043, %v1106
          %v1115 = vsub.f32 %v1044, %v1107
          %v1116 = vsub.f32 %v1045, %v1108
          %v1117 = vmul.f32 %v1093, %v1068
          %v1118 = vmul.f32 %v1094, %v1068
          %v1119 = vmul.f32 %v1095, %v1068
          %v1120 = vmul.f32 %v1096, %v1068
          %v1121 = vmul.f32 %v1097, %v1068
          %v1122 = vmul.f32 %v1098, %v1068
          %v1123 = vmul.f32 %v1099, %v1068
          %v1124 = vmul.f32 %v1100, %v1068
          %v1125 = vsub.f32 %v1054, %v1117
          %v1126 = vsub.f32 %v1055, %v1118
          %v1127 = vsub.f32 %v1056, %v1119
          %v1128 = vsub.f32 %v1057, %v1120
          %v1129 = vsub.f32 %v1058, %v1121
          %v1130 = vsub.f32 %v1059, %v1122
          %v1131 = vsub.f32 %v1060, %v1123
          %v1132 = vsub.f32 %v1061, %v1124
          %v1133 = vrcp.pop %v1115
          %v1134 = vmul.f32 %v1115, %v1133
          %v1135 = vsub.f32 2.0, %v1134
          %v1136 = vmul.f32 %v1133, %v1135
          %v1137 = vperm.slane %v1136, 6
          %v1138 = vmul.f32 %v1115, %v1137
          %v1139 = vmul.f32 %v1131, %v1137
          %v1141 = vrot.slane %v666, 2
          %v1142 = vrot.slane %v666, 3
          %v1143 = vrot.slane %v666, 4
          %v1144 = vrot.slane %v666, 5
          %v1145 = vrot.slane %v666, 6
          %v1146 = vrot.slane %v666, 7
          %v1147 = vrot.slane %v666, 1
          %v1156 = vsub.f32 %v1109, %v1141
          %v1157 = vsub.f32 %v1110, %v1142
          %v1158 = vsub.f32 %v1111, %v1143
          %v1159 = vsub.f32 %v1112, %v1144
          %v1160 = vsub.f32 %v1113, %v1145
          %v1161 = vsub.f32 %v1114, %v1146
          %v1162 = vsub.f32 %v1115, %v666
          %v1163 = vsub.f32 %v1116, %v1147
          %v1164 = vperm.slane %v1156, 6
          %v1165 = vperm.slane %v1157, 6
          %v1166 = vperm.slane %v1158, 6
          %v1167 = vperm.slane %v1159, 6
          %v1168 = vperm.slane %v1160, 6
          %v1169 = vperm.slane %v1161, 6
          %v1170 = vperm.slane %v1162, 6
          %v1171 = vperm.slane %v1163, 6
          %v1172 = vmul.f32 %v1164, %v1138
          %v1173 = vmul.f32 %v1165, %v1138
          %v1174 = vmul.f32 %v1166, %v1138
          %v1175 = vmul.f32 %v1167, %v1138
          %v1176 = vmul.f32 %v1168, %v1138
          %v1177 = vmul.f32 %v1169, %v1138
          %v1178 = vmul.f32 %v1170, %v1138
          %v1179 = vmul.f32 %v1171, %v1138
          %v1180 = vsub.f32 %v1109, %v1172
          %v1181 = vsub.f32 %v1110, %v1173
          %v1182 = vsub.f32 %v1111, %v1174
          %v1183 = vsub.f32 %v1112, %v1175
          %v1184 = vsub.f32 %v1113, %v1176
          %v1185 = vsub.f32 %v1114, %v1177
          %v1186 = vsub.f32 %v1115, %v1178
          %v1187 = vsub.f32 %v1116, %v1179
          %v1188 = vmul.f32 %v1164, %v1139
          %v1189 = vmul.f32 %v1165, %v1139
          %v1190 = vmul.f32 %v1166, %v1139
          %v1191 = vmul.f32 %v1167, %v1139
          %v1192 = vmul.f32 %v1168, %v1139
          %v1193 = vmul.f32 %v1169, %v1139
          %v1194 = vmul.f32 %v1170, %v1139
          %v1195 = vmul.f32 %v1171, %v1139
          %v1196 = vsub.f32 %v1125, %v1188
          %v1197 = vsub.f32 %v1126, %v1189
          %v1198 = vsub.f32 %v1127, %v1190
          %v1199 = vsub.f32 %v1128, %v1191
          %v1200 = vsub.f32 %v1129, %v1192
          %v1201 = vsub.f32 %v1130, %v1193
          %v1202 = vsub.f32 %v1131, %v1194
          %v1203 = vsub.f32 %v1132, %v1195
          %v1204 = vrcp.pop %v1187
          %v1205 = vmul.f32 %v1187, %v1204
          %v1206 = vsub.f32 2.0, %v1205
          %v1207 = vmul.f32 %v1204, %v1206
          %v1208 = vperm.slane %v1207, 7
          %v1209 = vmul.f32 %v1203, %v1208
          %v1211 = vrot.slane %v667, 1
          %v1212 = vrot.slane %v667, 2
          %v1213 = vrot.slane %v667, 3
          %v1214 = vrot.slane %v667, 4
          %v1215 = vrot.slane %v667, 5
          %v1216 = vrot.slane %v667, 6
          %v1217 = vrot.slane %v667, 7
          %v1226 = vsub.f32 %v1180, %v1211
          %v1227 = vsub.f32 %v1181, %v1212
          %v1228 = vsub.f32 %v1182, %v1213
          %v1229 = vsub.f32 %v1183, %v1214
          %v1230 = vsub.f32 %v1184, %v1215
          %v1231 = vsub.f32 %v1185, %v1216
          %v1232 = vsub.f32 %v1186, %v1217
          %v1233 = vsub.f32 %v1187, %v667
          %v1234 = vperm.slane %v1226, 7
          %v1235 = vperm.slane %v1227, 7
          %v1236 = vperm.slane %v1228, 7
          %v1237 = vperm.slane %v1229, 7
          %v1238 = vperm.slane %v1230, 7
          %v1239 = vperm.slane %v1231, 7
          %v1240 = vperm.slane %v1232, 7
          %v1241 = vperm.slane %v1233, 7
          %v1242 = vmul.f32 %v1234, %v1209
          %v1243 = vmul.f32 %v1235, %v1209
          %v1244 = vmul.f32 %v1236, %v1209
          %v1245 = vmul.f32 %v1237, %v1209
          %v1246 = vmul.f32 %v1238, %v1209
          %v1247 = vmul.f32 %v1239, %v1209
          %v1248 = vmul.f32 %v1240, %v1209
          %v1249 = vmul.f32 %v1241, %v1209
          %v1250 = vsub.f32 %v1196, %v1242
          %v1251 = vsub.f32 %v1197, %v1243
          %v1252 = vsub.f32 %v1198, %v1244
          %v1253 = vsub.f32 %v1199, %v1245
          %v1254 = vsub.f32 %v1200, %v1246
          %v1255 = vsub.f32 %v1201, %v1247
          %v1256 = vsub.f32 %v1202, %v1248
          %v1257 = vsub.f32 %v1203, %v1249
          %v1258 = vmul.f32 %v668, %v1250
          %v1259 = vmul.f32 %v668, %v1251
          %v1260 = vmul.f32 %v668, %v1252
          %v1261 = vmul.f32 %v668, %v1253
          %v1262 = vmul.f32 %v668, %v1254
          %v1263 = vmul.f32 %v668, %v1255
          %v1264 = vmul.f32 %v668, %v1256
          %v1265 = vmul.f32 %v668, %v1257
          %1266 = vst [vmem:[%s687] sm:$0xff] %v1258
          %1267 = vst [vmem:[%s687 + $0x10] sm:$0xff] %v1259
          %1268 = vst [vmem:[%s687 + $0x20] sm:$0xff] %v1260
          %1269 = vst [vmem:[%s687 + $0x30] sm:$0xff] %v1261
          %1270 = vst [vmem:[%s687 + $0x40] sm:$0xff] %v1262
          %1271 = vst [vmem:[%s687 + $0x50] sm:$0xff] %v1263
          %1272 = vst [vmem:[%s687 + $0x60] sm:$0xff] %v1264
          %1273 = vst [vmem:[%s687 + $0x70] sm:$0xff] %v1265
          %v1274 = vmul.f32 %v1250, %v706
          %v1275 = vmul.f32 %v1251, %v706
          %v1276 = vmul.f32 %v1252, %v706
          %v1277 = vmul.f32 %v1253, %v706
          %v1278 = vmul.f32 %v1254, %v706
          %v1279 = vmul.f32 %v1255, %v706
          %v1280 = vmul.f32 %v1256, %v706
          %v1281 = vmul.f32 %v1257, %v706
          %v1282 = vrot.slane %v1274, 4
          %v1283 = vadd.f32 %v1274, %v1282
          %v1284 = vrot.slane %v1283, 2
          %v1285 = vadd.f32 %v1283, %v1284
          %v1286 = vrot.slane %v1285, 1
          %v1287 = vadd.f32 %v1285, %v1286
          %v1288 = vrot.slane %v1275, 4
          %v1289 = vadd.f32 %v1275, %v1288
          %v1290 = vrot.slane %v1289, 2
          %v1291 = vadd.f32 %v1289, %v1290
          %v1292 = vrot.slane %v1291, 1
          %v1293 = vadd.f32 %v1291, %v1292
          %v1294 = vrot.slane %v1276, 4
          %v1295 = vadd.f32 %v1276, %v1294
          %v1296 = vrot.slane %v1295, 2
          %v1297 = vadd.f32 %v1295, %v1296
          %v1298 = vrot.slane %v1297, 1
          %v1299 = vadd.f32 %v1297, %v1298
          %v1300 = vrot.slane %v1277, 4
          %v1301 = vadd.f32 %v1277, %v1300
          %v1302 = vrot.slane %v1301, 2
          %v1303 = vadd.f32 %v1301, %v1302
          %v1304 = vrot.slane %v1303, 1
          %v1305 = vadd.f32 %v1303, %v1304
          %v1306 = vrot.slane %v1278, 4
          %v1307 = vadd.f32 %v1278, %v1306
          %v1308 = vrot.slane %v1307, 2
          %v1309 = vadd.f32 %v1307, %v1308
          %v1310 = vrot.slane %v1309, 1
          %v1311 = vadd.f32 %v1309, %v1310
          %v1312 = vrot.slane %v1279, 4
          %v1313 = vadd.f32 %v1279, %v1312
          %v1314 = vrot.slane %v1313, 2
          %v1315 = vadd.f32 %v1313, %v1314
          %v1316 = vrot.slane %v1315, 1
          %v1317 = vadd.f32 %v1315, %v1316
          %v1318 = vrot.slane %v1280, 4
          %v1319 = vadd.f32 %v1280, %v1318
          %v1320 = vrot.slane %v1319, 2
          %v1321 = vadd.f32 %v1319, %v1320
          %v1322 = vrot.slane %v1321, 1
          %v1323 = vadd.f32 %v1321, %v1322
          %v1324 = vrot.slane %v1281, 4
          %v1325 = vadd.f32 %v1281, %v1324
          %v1326 = vrot.slane %v1325, 2
          %v1327 = vadd.f32 %v1325, %v1326
          %v1328 = vrot.slane %v1327, 1
          %v1329 = vadd.f32 %v1327, %v1328
          %vm1338 = vcmask 1041409
          %v1339 = vsel %vm1338, %v1293, %v1287
          %vm1340 = vcmask 1042434
          %v1341 = vsel %vm1340, %v1299, %v1339
          %vm1342 = vcmask 1043459
          %v1343 = vsel %vm1342, %v1305, %v1341
          %vm1344 = vcmask 1044484
          %v1345 = vsel %vm1344, %v1311, %v1343
          %vm1346 = vcmask 1045509
          %v1347 = vsel %vm1346, %v1317, %v1345
          %vm1348 = vcmask 1046534
          %v1349 = vsel %vm1348, %v1323, %v1347
          %vm1350 = vcmask 1047559
          %v1351 = vsel %vm1350, %v1329, %v1349
          %1353 = vst [vmem:[%s705] sm:$0xff] %v1351
        $region53: #{tpu_custom_call.1} parent=35 // loop_footer
          %s682 = sadd.s32 1, %s678
        $region54: #{tpu_custom_call.1} parent=35 // loop_footer_branch
          %677 = sbr.rel target = $region50
        $region55: #{tpu_custom_call.1} parent=35 // loop_exit
          _
        %s1354 = sand.u32 %s125, 1
        %s1355 = scalar_lea.sflag [#allocation5], %s1354
        %s1356 = sand.u32 %s125, 1
        %s1357 = smul.addr %s1356, 16
        %s1358 = scalar_lea.vmem [#allocation9], %s1357
        %s1359 = sand.u32 %s151, 1
        %s1360 = scalar_lea.sflag [#allocation11], %s1359
        %s1361 = sand.u32 %s151, 1
        %s1362 = smul.addr %s1361, 128
        %s1363 = scalar_lea.vmem [#allocation10], %s1362
        // Predicated region
        $region56: #{tpu_custom_call.1} parent=35 // pred_check
          %p1364 = pneg %p135
        $region57: #{tpu_custom_call.1} parent=35 // pred_check_branch
          %1366 = sbr.rel (%p1364) target = $region59
        $region58: #{tpu_custom_call.1} parent=35 // pred_region
          %s1367 = smul.u32 2, %s28
          %1369 = vsyncadd %s1355, 0
          %s1370 = smul.addr %s1367, 8
          %s1371 = scalar_lea.hbm %s4, %s1370
          %s1373 = sshll.u32 %s1358, 4
          %s1374 = int_to_ptr.vmem [resolvable:$true] %s1373
          %s1375 = sshll.u32 %s1371, 4
          %s1376 = int_to_ptr.hbm [resolvable:$true] %s1375
          %1378 = dma.vmem_to_hbm [thread:$0]  %s1374, 256, %s1376, %s1355
        $region59: #{tpu_custom_call.1} parent=35 // pred_fallthru
          _
        // Predicated region
        $region60: #{tpu_custom_call.1} parent=35 // pred_check
          %p1379 = pneg %p161
        $region61: #{tpu_custom_call.1} parent=35 // pred_check_branch
          %1381 = sbr.rel (%p1379) target = $region63
        $region62: #{tpu_custom_call.1} parent=35 // pred_region
          %s1382 = smul.u32 2, %s28
          %1384 = vsyncadd %s1360, 0
          %s1385 = smul.addr %s1382, 8
          %s1386 = scalar_lea.hbm %s5, %s1385
          %s1387 = sshll.u32 %s1363, 4
          %s1388 = int_to_ptr.vmem [resolvable:$true] %s1387
          %s1389 = sshll.u32 %s1386, 4
          %s1390 = int_to_ptr.hbm [resolvable:$true] %s1389
          %1395 = dma.vmem_to_hbm [thread:$0]  %s1388, 2048, %s1390, %s1360, 256, 512, 16
        $region63: #{tpu_custom_call.1} parent=35 // pred_fallthru
          _
      $region36: #{tpu_custom_call.1} parent=5 // pred_fallthru
        _
      %p1396 = scmp.le.s32.totalorder 2, %s23
      // Predicated region
      $region64: #{tpu_custom_call.1} parent=5 // pred_check
        %p1397 = pneg %p1396
      $region65: #{tpu_custom_call.1} parent=5 // pred_check_branch
        %1399 = sbr.rel (%p1397) target = $region67
      $region66: #{tpu_custom_call.1} parent=5 // pred_region
        %s1400 = ssub.s32 %s23, 2
        // Predicated region
        $region68: #{tpu_custom_call.1} parent=66 // pred_check
          %p1401 = pneg %p141
        $region69: #{tpu_custom_call.1} parent=66 // pred_check_branch
          %1403 = sbr.rel (%p1401) target = $region71
        $region70: #{tpu_custom_call.1} parent=66 // pred_region
          %s1404 = sand.u32 %s126, 1
          %s1405 = scalar_lea.sflag [#allocation5], %s1404
          %s1406 = sand.u32 %s126, 1
          %s1407 = smul.addr %s1406, 16
          %s1408 = scalar_lea.vmem [#allocation9], %s1407
          %1410 = dma.done %s1405, 256
        $region71: #{tpu_custom_call.1} parent=66 // pred_fallthru
          _
        // Predicated region
        $region72: #{tpu_custom_call.1} parent=66 // pred_check
          %p1411 = pneg %p167
        $region73: #{tpu_custom_call.1} parent=66 // pred_check_branch
          %1413 = sbr.rel (%p1411) target = $region75
        $region74: #{tpu_custom_call.1} parent=66 // pred_region
          %s1414 = sand.u32 %s152, 1
          %s1415 = scalar_lea.sflag [#allocation11], %s1414
          %s1416 = sand.u32 %s152, 1
          %s1417 = smul.addr %s1416, 128
          %s1418 = scalar_lea.vmem [#allocation10], %s1417
          %1420 = dma.done %s1415, 2048
        $region75: #{tpu_custom_call.1} parent=66 // pred_fallthru
          _
      $region67: #{tpu_custom_call.1} parent=5 // pred_fallthru
        _
    $region6: #{tpu_custom_call.1} parent=1 // loop_footer
      %s27 = sadd.s32 1, %s23
    $region7: #{tpu_custom_call.1} parent=1 // loop_footer_branch
      %22 = sbr.rel target = $region3
    $region8: #{tpu_custom_call.1} parent=1 // loop_exit
      _
    %1421 = vsyncpa [#allocation4], 1
    %s1422 = scalar_lea.sflag [#allocation4], 1
    %1423 = vsyncpa %s1422, 1
    %1424 = vsyncpa [#allocation7], 1
    %1425 = vsyncpa [#allocation5], 1
    %s1426 = scalar_lea.sflag [#allocation5], 1
    %1427 = vsyncpa %s1426, 1
    %1428 = vsyncpa [#allocation11], 1
    %s1429 = scalar_lea.sflag [#allocation11], 1
    %1430 = vsyncpa %s1429, 1

</llo_original>
